<compile_context>
chip_gen: v5e
topology: v5e:2x2
jax: 0.10.0
libtpu: 0.0.40
codegen_flags: <defaults>
</compile_context>

<pallas_src>
import functools

import jax
import jax.numpy as jnp
from jax.experimental import pallas as pl
from jax.experimental.pallas import tpu as pltpu


MASK_VALUE = -2.3819763e38          # same constant the PyTorch generate() uses (fp32 only)
VMEM_LIMIT = 32 * 1024 * 1024       # conservative scoped-VMEM cap, safe on v5e/v6e/v7x


def _round_up(x, m):
    return ((x + m - 1) // m) * m


def _pad_to(x, shape):
    pads = [(0, t - s) for s, t in zip(x.shape, shape)]
    if all(p == (0, 0) for p in pads):
        return x
    return jnp.pad(x, pads)


# ----------------------------- RMSNorm kernel -------------------------------

def _rmsnorm_kernel(x_ref, w_ref, o_ref, *, eps):
    x = x_ref[...].astype(jnp.float32)
    var = jnp.mean(x * x, axis=-1, keepdims=True)
    nx = x * jax.lax.rsqrt(var + eps)
    o_ref[...] = (nx * (1.0 + w_ref[...].astype(jnp.float32))).astype(o_ref.dtype)


def rmsnorm(x2d, w, eps, *, tm=256):
    """x2d: (M, H), w: (1, H). Gemma RMSNorm: x * rsqrt(mean(x^2)+eps) * (1+w)."""
    M, H = x2d.shape
    tm = min(tm, _round_up(M, 8))
    Mp = _round_up(M, tm)
    xp = _pad_to(x2d, (Mp, H))
    out = pl.pallas_call(
        functools.partial(_rmsnorm_kernel, eps=eps),
        out_shape=jax.ShapeDtypeStruct((Mp, H), x2d.dtype),
        grid=(Mp // tm,),
        in_specs=[pl.BlockSpec((tm, H), lambda i: (i, 0)),
                  pl.BlockSpec((1, H), lambda i: (0, 0))],
        out_specs=pl.BlockSpec((tm, H), lambda i: (i, 0)),
        compiler_params=pltpu.CompilerParams(
            dimension_semantics=("parallel",),
            vmem_limit_bytes=VMEM_LIMIT),
    )(xp, w)
    return out[:M] if Mp != M else out


# ------------------------ tiled matmul (linear) kernel -----------------------

def _matmul_kernel(x_ref, w_ref, o_ref, acc_ref):
    @pl.when(pl.program_id(2) == 0)
    def _():
        acc_ref[...] = jnp.zeros_like(acc_ref)

    acc_ref[...] += jnp.dot(x_ref[...], w_ref[...],
                            preferred_element_type=jnp.float32)

    @pl.when(pl.program_id(2) == pl.num_programs(2) - 1)
    def _():
        o_ref[...] = acc_ref[...].astype(o_ref.dtype)


def linear(x2d, w, *, tm=256, tn=256, tk=512, out_dtype=None):
    """x2d: (M, K) @ w: (K, N) -> (M, N). bf16 MXU inputs, fp32 accumulation."""
    M, K = x2d.shape
    N = w.shape[1]
    out_dtype = out_dtype or x2d.dtype
    tm = min(tm, _round_up(M, 8))
    tk = min(tk, _round_up(K, 128))
    tn = min(tn, _round_up(N, 128))
    Mp, Kp, Np = _round_up(M, tm), _round_up(K, tk), _round_up(N, tn)
    xp = _pad_to(x2d, (Mp, Kp))
    wp = _pad_to(w, (Kp, Np))
    out = pl.pallas_call(
        _matmul_kernel,
        out_shape=jax.ShapeDtypeStruct((Mp, Np), out_dtype),
        grid=(Mp // tm, Np // tn, Kp // tk),
        in_specs=[pl.BlockSpec((tm, tk), lambda i, j, k: (i, k)),
                  pl.BlockSpec((tk, tn), lambda i, j, k: (k, j))],
        out_specs=pl.BlockSpec((tm, tn), lambda i, j, k: (i, j)),
        scratch_shapes=[pltpu.VMEM((tm, tn), jnp.float32)],
        compiler_params=pltpu.CompilerParams(
            dimension_semantics=("parallel", "parallel", "arbitrary"),
            vmem_limit_bytes=VMEM_LIMIT),
    )(xp, wp)
    return out[:M, :N] if (Mp, Np) != (M, N) else out


# -------------------- fused GeGLU MLP, tiled over I --------------------------

def _mlp_kernel(x_ref, wg_ref, wu_ref, wd_ref, o_ref, acc_ref):
    @pl.when(pl.program_id(1) == 0)
    def _():
        acc_ref[...] = jnp.zeros_like(acc_ref)

    x = x_ref[...]
    gate = jnp.dot(x, wg_ref[...], preferred_element_type=jnp.float32)
    up = jnp.dot(x, wu_ref[...], preferred_element_type=jnp.float32)
    fuse = jax.nn.gelu(gate, approximate=True) * up          # GeGLU (tanh approx)
    acc_ref[...] += jnp.dot(fuse.astype(x.dtype), wd_ref[...],
                            preferred_element_type=jnp.float32)

    @pl.when(pl.program_id(1) == pl.num_programs(1) - 1)
    def _():
        o_ref[...] = acc_ref[...].astype(o_ref.dtype)


def geglu_mlp(x2d, wg, wu, wd, *, tm=256, ti=1024):
    """down( gelu_tanh(x@wg) * (x@wu) ), accumulated over I tiles. x2d: (M, H)."""
    M, H = x2d.shape
    I = wg.shape[1]
    tm = min(tm, _round_up(M, 8))
    ti = min(ti, _round_up(I, 128))
    Mp, Ip = _round_up(M, tm), _round_up(I, ti)
    xp = _pad_to(x2d, (Mp, H))
    wgp = _pad_to(wg, (H, Ip))
    wup = _pad_to(wu, (H, Ip))
    wdp = _pad_to(wd, (Ip, H))
    out = pl.pallas_call(
        _mlp_kernel,
        out_shape=jax.ShapeDtypeStruct((Mp, H), x2d.dtype),
        grid=(Mp // tm, Ip // ti),
        in_specs=[pl.BlockSpec((tm, H), lambda i, j: (i, 0)),
                  pl.BlockSpec((H, ti), lambda i, j: (0, j)),
                  pl.BlockSpec((H, ti), lambda i, j: (0, j)),
                  pl.BlockSpec((ti, H), lambda i, j: (j, 0))],
        out_specs=pl.BlockSpec((tm, H), lambda i, j: (i, 0)),
        scratch_shapes=[pltpu.VMEM((tm, H), jnp.float32)],
        compiler_params=pltpu.CompilerParams(
            dimension_semantics=("parallel", "arbitrary"),
            vmem_limit_bytes=VMEM_LIMIT),
    )(xp, wgp, wup, wdp)
    return out[:M] if Mp != M else out


# ------------- flash-style GQA attention over the un-expanded cache ----------

def _attn_kernel(q_ref, k_ref, v_ref, m_ref, o_ref, m_sc, l_sc, acc_sc, *, scale):
    kt = pl.program_id(2)

    @pl.when(kt == 0)
    def _():
        m_sc[...] = jnp.full_like(m_sc, -jnp.inf)
        l_sc[...] = jnp.zeros_like(l_sc)
        acc_sc[...] = jnp.zeros_like(acc_sc)

    q = q_ref[0]                      # (R, S, D)  bf16 query heads of this kv group
    k = k_ref[0, 0]                   # (Tt, D)    bf16
    v = v_ref[0, 0]                   # (Tt, D)    bf16
    mask = m_ref[0, 0]                # (S, Tt)    fp32

    s = jnp.einsum('rsd,td->rst', q, k,
                   preferred_element_type=jnp.float32) * scale
    s = s + mask[None, :, :]

    m_prev = m_sc[...]
    m_new = jnp.maximum(m_prev, jnp.max(s, axis=-1, keepdims=True))
    alpha = jnp.exp(m_prev - m_new)
    p = jnp.exp(s - m_new)
    l_sc[...] = alpha * l_sc[...] + jnp.sum(p, axis=-1, keepdims=True)
    acc_sc[...] = alpha * acc_sc[...] + jnp.einsum(
        'rst,td->rsd', p.astype(v.dtype), v, preferred_element_type=jnp.float32)
    m_sc[...] = m_new

    @pl.when(kt == pl.num_programs(2) - 1)
    def _():
        o_ref[0] = (acc_sc[...] *
                    pl.reciprocal(l_sc[...], approx=True)).astype(o_ref.dtype)


def attention(q, k, v, mask, scale, *, tt=512):
    """q: (B, nH, S, D); k/v: (B, nKV, T, D) un-expanded GQA cache; mask: (1,1,S,T)."""
    B, nH, S, D = q.shape
    nKV, T = k.shape[1], k.shape[2]
    n_rep = nH // nKV
    if T <= tt:
        tt = _round_up(T, 8)          # single T tile
    else:
        tt = _round_up(tt, 128)
    Tp = _round_up(T, tt)
    kp = _pad_to(k, (B, nKV, Tp, D))
    vp = _pad_to(v, (B, nKV, Tp, D))
    mp = mask if Tp == T else jnp.pad(
        mask, ((0, 0), (0, 0), (0, 0), (0, Tp - T)), constant_values=MASK_VALUE)
    # TODO(synk): very long prefill would additionally tile S (queries); here S is small.
    return pl.pallas_call(
        functools.partial(_attn_kernel, scale=scale),
        out_shape=jax.ShapeDtypeStruct((B, nH, S, D), q.dtype),
        grid=(B, nKV, Tp // tt),
        in_specs=[pl.BlockSpec((1, n_rep, S, D), lambda b, h, t: (b, h, 0, 0)),
                  pl.BlockSpec((1, 1, tt, D), lambda b, h, t: (b, h, t, 0)),
                  pl.BlockSpec((1, 1, tt, D), lambda b, h, t: (b, h, t, 0)),
                  pl.BlockSpec((1, 1, S, tt), lambda b, h, t: (0, 0, 0, t))],
        out_specs=pl.BlockSpec((1, n_rep, S, D), lambda b, h, t: (b, h, 0, 0)),
        scratch_shapes=[pltpu.VMEM((n_rep, S, 1), jnp.float32),
                        pltpu.VMEM((n_rep, S, 1), jnp.float32),
                        pltpu.VMEM((n_rep, S, D), jnp.float32)],
        compiler_params=pltpu.CompilerParams(
            dimension_semantics=("parallel", "parallel", "arbitrary"),
            vmem_limit_bytes=VMEM_LIMIT),
    )(q, kp, vp, mp)


# ---------------- vocab-tiled lm-head with fused greedy argmax ---------------

def _lmhead_argmax_kernel(hs_ref, w_ref, idx_ref, max_sc, *, tv, vocab):
    j = pl.program_id(0)

    @pl.when(j == 0)
    def _():
        max_sc[...] = jnp.full_like(max_sc, -jnp.inf)
        idx_ref[...] = jnp.zeros_like(idx_ref)

    logits = jnp.dot(hs_ref[...], w_ref[...],
                     preferred_element_type=jnp.float32)        # (B, tv)
    col = jax.lax.broadcasted_iota(jnp.int32, logits.shape, 1) + j * tv
    logits = jnp.where(col < vocab, logits, -jnp.inf)           # mask vocab padding

    tile_max = jnp.max(logits, axis=-1, keepdims=True)                       # (B, 1)
    is_max = logits == tile_max
    tile_arg = jnp.min(jnp.where(is_max, col, jnp.int32(2 ** 30)),
                       axis=-1, keepdims=True)                               # first hit
    better = tile_max > max_sc[...]
    idx_ref[...] = jnp.where(better, tile_arg, idx_ref[...])
    max_sc[...] = jnp.maximum(max_sc[...], tile_max)


def lm_head_argmax(hs, w_t, *, tv=512):
    """hs: (B, H) @ w_t: (H, V) -> argmax token ids (B,), vocab-tiled, logits stay in VMEM."""
    B, H = hs.shape
    V = w_t.shape[1]
    tv = min(tv, _round_up(V, 128))
    Vp = _round_up(V, tv)
    wp = _pad_to(w_t, (H, Vp))
    idx = pl.pallas_call(
        functools.partial(_lmhead_argmax_kernel, tv=tv, vocab=V),
        out_shape=jax.ShapeDtypeStruct((B, 1), jnp.int32),
        grid=(Vp // tv,),
        in_specs=[pl.BlockSpec((B, H), lambda j: (0, 0)),
                  pl.BlockSpec((H, tv), lambda j: (0, j))],
        out_specs=pl.BlockSpec((B, 1), lambda j: (0, 0)),
        scratch_shapes=[pltpu.VMEM((B, 1), jnp.float32)],
        compiler_params=pltpu.CompilerParams(
            dimension_semantics=("arbitrary",),
            vmem_limit_bytes=VMEM_LIMIT),
    )(hs, wp)
    return idx[:, 0]


# ------------------------------- JAX glue ------------------------------------

def precompute_freqs_cis(dim, end, theta=10000.0):
    inv = 1.0 / (theta ** (jnp.arange(0, dim, 2, dtype=jnp.float32) / dim))
    t = jnp.arange(end, dtype=jnp.float32)
    freqs = jnp.outer(t, inv)                       # (end, dim//2)
    return jnp.cos(freqs), jnp.sin(freqs)


def apply_rotary_emb(x, cos, sin):
    # x: (B, S, n_heads, D); cos/sin: (S, D//2)
    # matches torch view_as_complex(chunk)*freqs_cis: out = [x1*c - x2*s, x1*s + x2*c]
    dtype = x.dtype
    x = x.astype(jnp.float32)
    d2 = x.shape[-1] // 2
    x1, x2 = x[..., :d2], x[..., d2:]
    c = cos[None, :, None, :]
    s = sin[None, :, None, :]
    return jnp.concatenate([x1 * c - x2 * s, x1 * s + x2 * c], axis=-1).astype(dtype)


def init_params(key, cfg, dtype=jnp.bfloat16):
    H = cfg['hidden_size']; I = cfg['intermediate_size']
    nH = cfg['num_attention_heads']; nKV = cfg['num_key_value_heads']
    D = cfg['head_dim']; V = cfg['vocab_size']
    keys = jax.random.split(key, 1 + 5 * cfg['num_hidden_layers'])
    embed = (jax.random.normal(keys[0], (V, H), jnp.float32) * 0.02).astype(dtype)
    params = {'embed': embed,
              'embed_t': embed.T,                   # tied lm-head, pre-transposed ONCE
              'final_norm': jnp.zeros((1, H), jnp.float32),
              'layers': []}
    ki = 1
    for _ in range(cfg['num_hidden_layers']):
        layer = {
            'input_norm': jnp.zeros((1, H), jnp.float32),
            'post_norm': jnp.zeros((1, H), jnp.float32),
            'w_qkv': (jax.random.normal(keys[ki + 0], (H, (nH + 2 * nKV) * D),
                                        jnp.float32) * 0.02).astype(dtype),
            'w_o': (jax.random.normal(keys[ki + 1], (nH * D, H),
                                      jnp.float32) * 0.02).astype(dtype),
            'w_gate': (jax.random.normal(keys[ki + 2], (H, I),
                                         jnp.float32) * 0.02).astype(dtype),
            'w_up': (jax.random.normal(keys[ki + 3], (H, I),
                                       jnp.float32) * 0.02).astype(dtype),
            'w_down': (jax.random.normal(keys[ki + 4], (I, H),
                                         jnp.float32) * 0.02).astype(dtype),
        }
        ki += 5
        params['layers'].append(layer)
    return params


def ava_forward(params, cfg, token_ids, input_positions, kv_caches, mask,
                output_positions, cos_table, sin_table):
    B, S = token_ids.shape
    H = cfg['hidden_size']; nH = cfg['num_attention_heads']
    nKV = cfg['num_key_value_heads']; D = cfg['head_dim']
    eps = cfg['rms_norm_eps']
    scale = D ** -0.5

    cos = cos_table[input_positions]               # (S, D//2)
    sin = sin_table[input_positions]

    # Embedding + sqrt(hidden) scaling (AvaForCausalLM.forward)
    h = params['embed'][token_ids] * (H ** 0.5)    # (B, S, H) bf16

    new_caches = []
    kv_write_indices = input_positions             # forward() overrides the arg
    for li, layer in enumerate(params['layers']):
        # --- self attention block ---
        residual = h
        x = rmsnorm(h.reshape(B * S, H), layer['input_norm'], eps).reshape(B, S, H)

        qkv = linear(x.reshape(B * S, H), layer['w_qkv']).reshape(B, S, -1)
        q = qkv[..., :nH * D].reshape(B, S, nH, D)
        k = qkv[..., nH * D:(nH + nKV) * D].reshape(B, S, nKV, D)
        v = qkv[..., (nH + nKV) * D:].reshape(B, S, nKV, D)

        q = apply_rotary_emb(q, cos, sin)
        k = apply_rotary_emb(k, cos, sin)

        k_cache, v_cache = kv_caches[li]
        # donated caches -> XLA performs this index_copy_ in place (no full copy)
        k_cache = k_cache.at[:, kv_write_indices].set(k.astype(k_cache.dtype))
        v_cache = v_cache.at[:, kv_write_indices].set(v.astype(v_cache.dtype))
        new_caches.append((k_cache, v_cache))

        # head-major views for the flash kernel (un-expanded nKV heads, no jnp.repeat)
        # TODO(synk): a production kernel would store the cache head-major to avoid
        # this per-layer transpose of the (nKV-sized) cache entirely.
        qT = q.transpose(0, 2, 1, 3)               # (B, nH,  S, D)
        kT = k_cache.transpose(0, 2, 1, 3)         # (B, nKV, T, D)
        vT = v_cache.transpose(0, 2, 1, 3)

        attn_out = attention(qT, kT, vT, mask, scale)        # (B, nH, S, D)
        attn_out = attn_out.transpose(0, 2, 1, 3).reshape(B * S, nH * D)
        attn_out = linear(attn_out, layer['w_o']).reshape(B, S, H)
        h = residual + attn_out

        # --- MLP block ---
        residual = h
        x = rmsnorm(h.reshape(B * S, H), layer['post_norm'], eps).reshape(B, S, H)
        mlp_out = geglu_mlp(x.reshape(B * S, H), layer['w_gate'],
                            layer['w_up'], layer['w_down']).reshape(B, S, H)
        h = residual + mlp_out

    h = rmsnorm(h.reshape(B * S, H), params['final_norm'], eps).reshape(B, S, H)

    # --- sampler (temperatures=None -> greedy argmax over tied-embedding logits) ---
    hs = jnp.take(h, output_positions, axis=1)[:, 0, :]      # (B, H)
    next_tokens = lm_head_argmax(hs, params['embed_t'])      # fused lm-head + argmax
    # TODO(synk): stochastic temperature/top-p/top-k sampling path not implemented
    # (forward is exercised with temperatures=None, which is pure greedy argmax).
    return next_tokens, new_caches


# --------------------------------- main --------------------------------------

if __name__ == "__main__":
    cfg = dict(
        vocab_size=64,
        hidden_size=32,
        intermediate_size=64,
        num_hidden_layers=2,
        num_attention_heads=4,
        num_key_value_heads=2,
        head_dim=8,
        max_position_embeddings=16,
        rms_norm_eps=1e-6,
        rope_theta=10000.0,
    )
    B, S = 2, 8
    T = cfg['max_position_embeddings']

    key = jax.random.PRNGKey(0)
    pkey, tkey = jax.random.split(key)
    params = init_params(pkey, cfg)

    token_ids = jax.random.randint(tkey, (B, S), 0, cfg['vocab_size'], dtype=jnp.int32)
    input_positions = jnp.arange(S, dtype=jnp.int32)
    output_positions = jnp.array([S - 1], dtype=jnp.int32)

    kv_caches = []
    for _ in range(cfg['num_hidden_layers']):
        size = (B, T, cfg['num_key_value_heads'], cfg['head_dim'])
        kv_caches.append((jnp.zeros(size, jnp.bfloat16), jnp.zeros(size, jnp.bfloat16)))

    # causal mask exactly as in generate(): (1,1,T,T) triu(-big, diag=1), rows selected
    full_mask = jnp.triu(jnp.full((T, T), MASK_VALUE, jnp.float32), k=1)[None, None]
    mask = full_mask[:, :, input_positions, :]               # (1, 1, S, T), fp32

    cos_table, sin_table = precompute_freqs_cis(
        cfg['head_dim'], cfg['max_position_embeddings'] * 2, cfg['rope_theta'])

    @functools.partial(jax.jit, donate_argnums=(2,))         # in-place KV-cache update
    def run(params, token_ids, kv_caches, input_positions, mask, output_positions,
            cos_table, sin_table):
        return ava_forward(params, cfg, token_ids, input_positions, kv_caches, mask,
                           output_positions, cos_table, sin_table)

    next_tokens, new_caches = run(params, token_ids, kv_caches, input_positions, mask,
                                  output_positions, cos_table, sin_table)

    jax.block_until_ready(next_tokens)
    assert next_tokens.shape == (B,)
    print("KERNEL_OK")
</pallas_src>

<mosaic_0001>
module attributes {stable_mosaic.version = 11 : i64} {
  func.func @_rmsnorm_kernel(%arg0: i32, %arg1: memref<16x32xbf16, #tpu.memory_space<vmem>>, %arg2: memref<1x32xf32, #tpu.memory_space<vmem>>, %arg3: memref<16x32xbf16, #tpu.memory_space<vmem>>) attributes {dimension_semantics = [#tpu.dimension_semantics<parallel>], iteration_bounds = array<i64: 1>, scalar_prefetch = 0 : i64, scratch_operands = 0 : i64, tpu.core_type = #tpu.core_type<tc>, window_params = [{transform_indices = @transform_0, window_bounds = array<i64: 16, 32>}, {pipeline_mode = #tpu.pipeline_mode<synchronous>, transform_indices = @transform_1, window_bounds = array<i64: 1, 32>}, {transform_indices = @transform_2, window_bounds = array<i64: 16, 32>}]} {
    %c0 = arith.constant 0 : index
    %c0_0 = arith.constant 0 : index
    %0 = vector.load %arg1[%c0, %c0_0] : memref<16x32xbf16, #tpu.memory_space<vmem>>, vector<16x32xbf16>
    %1 = arith.extf %0 : vector<16x32xbf16> to vector<16x32xf32>
    %2 = arith.mulf %1, %1 : vector<16x32xf32>
    %cst = arith.constant dense<0.000000e+00> : vector<16xf32>
    %3 = vector.multi_reduction <add>, %2, %cst [1] : vector<16x32xf32> to vector<16xf32>
    %4 = vector.shape_cast %3 : vector<16xf32> to vector<16x1xf32>
    %cst_1 = arith.constant 3.200000e+01 : f32
    %5 = vector.broadcast %cst_1 : f32 to vector<16x1xf32>
    %6 = arith.divf %4, %5 : vector<16x1xf32>
    %cst_2 = arith.constant 9.99999997E-7 : f32
    %7 = vector.broadcast %cst_2 : f32 to vector<16x1xf32>
    %8 = arith.addf %6, %7 : vector<16x1xf32>
    %9 = math.rsqrt %8 : vector<16x1xf32>
    %10 = vector.broadcast %9 : vector<16x1xf32> to vector<16x32xf32>
    %11 = arith.mulf %1, %10 : vector<16x32xf32>
    %c0_3 = arith.constant 0 : index
    %c0_4 = arith.constant 0 : index
    %12 = vector.load %arg2[%c0_3, %c0_4] : memref<1x32xf32, #tpu.memory_space<vmem>>, vector<1x32xf32>
    %cst_5 = arith.constant 1.000000e+00 : f32
    %13 = vector.broadcast %cst_5 : f32 to vector<1x32xf32>
    %14 = arith.addf %13, %12 : vector<1x32xf32>
    %15 = vector.broadcast %14 : vector<1x32xf32> to vector<16x32xf32>
    %16 = arith.mulf %11, %15 : vector<16x32xf32>
    %17 = arith.truncf %16 : vector<16x32xf32> to vector<16x32xbf16>
    %c0_6 = arith.constant 0 : index
    %c0_7 = arith.constant 0 : index
    %18 = vector.load %arg3[%c0_6, %c0_7] : memref<16x32xbf16, #tpu.memory_space<vmem>>, vector<16x32xbf16>
    tpu.vector_store %arg3[%c0_6, %c0_7], %17 {strides = array<i32>} : memref<16x32xbf16, #tpu.memory_space<vmem>>, vector<16x32xbf16>,
    return
  }
  func.func @transform_0(%arg0: i32) -> (i32, i32) {
    %c0_i32 = arith.constant 0 : i32
    %c0_i32_0 = arith.constant 0 : i32
    return %arg0, %c0_i32 : i32, i32
  }
  func.func @transform_1(%arg0: i32) -> (i32, i32) {
    %c0_i32 = arith.constant 0 : i32
    %c0_i32_0 = arith.constant 0 : i32
    %c0_i32_1 = arith.constant 0 : i32
    return %c0_i32, %c0_i32_0 : i32, i32
  }
  func.func @transform_2(%arg0: i32) -> (i32, i32) {
    %c0_i32 = arith.constant 0 : i32
    %c0_i32_0 = arith.constant 0 : i32
    return %arg0, %c0_i32 : i32, i32
  }
}

module attributes {stable_mosaic.version = 11 : i64} {
  func.func @_matmul_kernel(%arg0: i32, %arg1: i32, %arg2: i32, %arg3: memref<16x128xbf16, #tpu.memory_space<vmem>>, %arg4: memref<128x128xbf16, #tpu.memory_space<vmem>>, %arg5: memref<16x128xbf16, #tpu.memory_space<vmem>>, %arg6: memref<16x128xf32, #tpu.memory_space<vmem>>) attributes {dimension_semantics = [#tpu.dimension_semantics<parallel>, #tpu.dimension_semantics<parallel>, #tpu.dimension_semantics<arbitrary>], iteration_bounds = array<i64: 1, 1, 1>, scalar_prefetch = 0 : i64, scratch_operands = 1 : i64, tpu.core_type = #tpu.core_type<tc>, window_params = [{transform_indices = @transform_0, window_bounds = array<i64: 16, 128>}, {transform_indices = @transform_1, window_bounds = array<i64: 128, 128>}, {transform_indices = @transform_2, window_bounds = array<i64: 16, 128>}]} {
    %c0_i32 = arith.constant 0 : i32
    %0 = arith.cmpi eq, %arg2, %c0_i32 : i32
    %1 = arith.extui %0 : i1 to i32
    %c0_i32_0 = arith.constant 0 : i32
    %2 = arith.cmpi ne, %1, %c0_i32_0 : i32
    scf.if %2 {
      %cst_10 = arith.constant 0.000000e+00 : f32
      %12 = vector.broadcast %cst_10 : f32 to vector<16x128xf32>
      %c0_11 = arith.constant 0 : index
      %c0_12 = arith.constant 0 : index
      %13 = vector.load %arg6[%c0_11, %c0_12] : memref<16x128xf32, #tpu.memory_space<vmem>>, vector<16x128xf32>
      tpu.vector_store %arg6[%c0_11, %c0_12], %12 {strides = array<i32>} : memref<16x128xf32, #tpu.memory_space<vmem>>, vector<16x128xf32>,
    } else {
    }
    %c0 = arith.constant 0 : index
    %c0_1 = arith.constant 0 : index
    %3 = vector.load %arg6[%c0, %c0_1] : memref<16x128xf32, #tpu.memory_space<vmem>>, vector<16x128xf32>
    %c0_2 = arith.constant 0 : index
    %c0_3 = arith.constant 0 : index
    %4 = vector.load %arg3[%c0_2, %c0_3] : memref<16x128xbf16, #tpu.memory_space<vmem>>, vector<16x128xbf16>
    %c0_4 = arith.constant 0 : index
    %c0_5 = arith.constant 0 : index
    %5 = vector.load %arg4[%c0_4, %c0_5] : memref<128x128xbf16, #tpu.memory_space<vmem>>, vector<128x128xbf16>
    %cst = arith.constant dense<0.000000e+00> : vector<16x128xf32>
    %6 = tpu.matmul %4, %5, %cst {dimension_numbers = #tpu.dot_dimension_numbers<[1], [0], [0], [1], [0, 0, 1, 1], [], []>} : vector<16x128xbf16>, vector<128x128xbf16>, vector<16x128xf32> -> vector<16x128xf32>
    %7 = arith.addf %3, %6 : vector<16x128xf32>
    %c0_6 = arith.constant 0 : index
    %c0_7 = arith.constant 0 : index
    %8 = vector.load %arg6[%c0_6, %c0_7] : memref<16x128xf32, #tpu.memory_space<vmem>>, vector<16x128xf32>
    tpu.vector_store %arg6[%c0_6, %c0_7], %7 {strides = array<i32>} : memref<16x128xf32, #tpu.memory_space<vmem>>, vector<16x128xf32>,
    %c0_i32_8 = arith.constant 0 : i32
    %9 = arith.cmpi eq, %arg2, %c0_i32_8 : i32
    %10 = arith.extui %9 : i1 to i32
    %c0_i32_9 = arith.constant 0 : i32
    %11 = arith.cmpi ne, %10, %c0_i32_9 : i32
    scf.if %11 {
      %c0_10 = arith.constant 0 : index
      %c0_11 = arith.constant 0 : index
      %12 = vector.load %arg6[%c0_10, %c0_11] : memref<16x128xf32, #tpu.memory_space<vmem>>, vector<16x128xf32>
      %13 = arith.truncf %12 : vector<16x128xf32> to vector<16x128xbf16>
      %c0_12 = arith.constant 0 : index
      %c0_13 = arith.constant 0 : index
      %14 = vector.load %arg5[%c0_12, %c0_13] : memref<16x128xbf16, #tpu.memory_space<vmem>>, vector<16x128xbf16>
      tpu.vector_store %arg5[%c0_12, %c0_13], %13 {strides = array<i32>} : memref<16x128xbf16, #tpu.memory_space<vmem>>, vector<16x128xbf16>,
    } else {
    }
    return
  }
  func.func @transform_0(%arg0: i32, %arg1: i32, %arg2: i32) -> (i32, i32) {
    %c0_i32 = arith.constant 0 : i32
    return %arg0, %arg2 : i32, i32
  }
  func.func @transform_1(%arg0: i32, %arg1: i32, %arg2: i32) -> (i32, i32) {
    %c0_i32 = arith.constant 0 : i32
    return %arg2, %arg1 : i32, i32
  }
  func.func @transform_2(%arg0: i32, %arg1: i32, %arg2: i32) -> (i32, i32) {
    %c0_i32 = arith.constant 0 : i32
    return %arg0, %arg1 : i32, i32
  }
}

module attributes {stable_mosaic.version = 11 : i64} {
  func.func @_attn_kernel(%arg0: i32, %arg1: i32, %arg2: i32, %arg3: memref<1x2x8x8xbf16, #tpu.memory_space<vmem>>, %arg4: memref<1x1x16x8xbf16, #tpu.memory_space<vmem>>, %arg5: memref<1x1x16x8xbf16, #tpu.memory_space<vmem>>, %arg6: memref<1x1x8x16xf32, #tpu.memory_space<vmem>>, %arg7: memref<1x2x8x8xbf16, #tpu.memory_space<vmem>>, %arg8: memref<2x8x1xf32, #tpu.memory_space<vmem>>, %arg9: memref<2x8x1xf32, #tpu.memory_space<vmem>>, %arg10: memref<2x8x8xf32, #tpu.memory_space<vmem>>) attributes {dimension_semantics = [#tpu.dimension_semantics<parallel>, #tpu.dimension_semantics<parallel>, #tpu.dimension_semantics<arbitrary>], iteration_bounds = array<i64: 2, 2, 1>, scalar_prefetch = 0 : i64, scratch_operands = 3 : i64, tpu.core_type = #tpu.core_type<tc>, window_params = [{transform_indices = @transform_0, window_bounds = array<i64: 1, 2, 8, 8>}, {transform_indices = @transform_1, window_bounds = array<i64: 1, 1, 16, 8>}, {transform_indices = @transform_2, window_bounds = array<i64: 1, 1, 16, 8>}, {transform_indices = @transform_3, window_bounds = array<i64: 1, 1, 8, 16>}, {transform_indices = @transform_4, window_bounds = array<i64: 1, 2, 8, 8>}]} {
    %c0_i32 = arith.constant 0 : i32
    %0 = arith.cmpi eq, %arg2, %c0_i32 : i32
    %1 = arith.extui %0 : i1 to i32
    %c0_i32_0 = arith.constant 0 : i32
    %2 = arith.cmpi ne, %1, %c0_i32_0 : i32
    scf.if %2 {
      %cst_40 = arith.constant 0xFF800000 : f32
      %43 = vector.broadcast %cst_40 : f32 to vector<2x8x1xf32>
      %c0_41 = arith.constant 0 : index
      %c0_42 = arith.constant 0 : index
      %c0_43 = arith.constant 0 : index
      %44 = vector.load %arg8[%c0_41, %c0_42, %c0_43] : memref<2x8x1xf32, #tpu.memory_space<vmem>>, vector<2x8x1xf32>
      tpu.vector_store %arg8[%c0_41, %c0_42, %c0_43], %43 {strides = array<i32>} : memref<2x8x1xf32, #tpu.memory_space<vmem>>, vector<2x8x1xf32>,
      %cst_44 = arith.constant 0.000000e+00 : f32
      %45 = vector.broadcast %cst_44 : f32 to vector<2x8x1xf32>
      %c0_45 = arith.constant 0 : index
      %c0_46 = arith.constant 0 : index
      %c0_47 = arith.constant 0 : index
      %46 = vector.load %arg9[%c0_45, %c0_46, %c0_47] : memref<2x8x1xf32, #tpu.memory_space<vmem>>, vector<2x8x1xf32>
      tpu.vector_store %arg9[%c0_45, %c0_46, %c0_47], %45 {strides = array<i32>} : memref<2x8x1xf32, #tpu.memory_space<vmem>>, vector<2x8x1xf32>,
      %cst_48 = arith.constant 0.000000e+00 : f32
      %47 = vector.broadcast %cst_48 : f32 to vector<2x8x8xf32>
      %c0_49 = arith.constant 0 : index
      %c0_50 = arith.constant 0 : index
      %c0_51 = arith.constant 0 : index
      %48 = vector.load %arg10[%c0_49, %c0_50, %c0_51] : memref<2x8x8xf32, #tpu.memory_space<vmem>>, vector<2x8x8xf32>
      tpu.vector_store %arg10[%c0_49, %c0_50, %c0_51], %47 {strides = array<i32>} : memref<2x8x8xf32, #tpu.memory_space<vmem>>, vector<2x8x8xf32>,
    } else {
    }
    %c0 = arith.constant 0 : index
    %c0_1 = arith.constant 0 : index
    %c0_2 = arith.constant 0 : index
    %c0_3 = arith.constant 0 : index
    %3 = vector.load %arg3[%c0, %c0_1, %c0_2, %c0_3] : memref<1x2x8x8xbf16, #tpu.memory_space<vmem>>, vector<1x2x8x8xbf16>
    %4 = vector.shape_cast %3 : vector<1x2x8x8xbf16> to vector<2x8x8xbf16>
    %c0_4 = arith.constant 0 : index
    %c0_5 = arith.constant 0 : index
    %c0_6 = arith.constant 0 : index
    %c0_7 = arith.constant 0 : index
    %5 = vector.load %arg4[%c0_4, %c0_5, %c0_6, %c0_7] : memref<1x1x16x8xbf16, #tpu.memory_space<vmem>>, vector<1x1x16x8xbf16>
    %6 = vector.shape_cast %5 : vector<1x1x16x8xbf16> to vector<16x8xbf16>
    %c0_8 = arith.constant 0 : index
    %c0_9 = arith.constant 0 : index
    %c0_10 = arith.constant 0 : index
    %c0_11 = arith.constant 0 : index
    %7 = vector.load %arg5[%c0_8, %c0_9, %c0_10, %c0_11] : memref<1x1x16x8xbf16, #tpu.memory_space<vmem>>, vector<1x1x16x8xbf16>
    %8 = vector.shape_cast %7 : vector<1x1x16x8xbf16> to vector<16x8xbf16>
    %c0_12 = arith.constant 0 : index
    %c0_13 = arith.constant 0 : index
    %c0_14 = arith.constant 0 : index
    %c0_15 = arith.constant 0 : index
    %9 = vector.load %arg6[%c0_12, %c0_13, %c0_14, %c0_15] : memref<1x1x8x16xf32, #tpu.memory_space<vmem>>, vector<1x1x8x16xf32>
    %10 = vector.shape_cast %9 : vector<1x1x8x16xf32> to vector<8x16xf32>
    "tpu.trace_start"() <{level = 10 : i32, message = "rsd,td->rst"}> : () -> ()
    %cst = arith.constant dense<0.000000e+00> : vector<2x8x16xf32>
    %11 = tpu.matmul %4, %6, %cst {dimension_numbers = #tpu.dot_dimension_numbers<[2], [1], [0, 1], [0], [0, 0, 0, 1, 1, 0], [], []>} : vector<2x8x8xbf16>, vector<16x8xbf16>, vector<2x8x16xf32> -> vector<2x8x16xf32>
    "tpu.trace_stop"() : () -> ()
    %cst_16 = arith.constant 0.353553385 : f32
    %12 = vector.broadcast %cst_16 : f32 to vector<2x8x16xf32>
    %13 = arith.mulf %11, %12 : vector<2x8x16xf32>
    %14 = vector.shape_cast %10 : vector<8x16xf32> to vector<1x8x16xf32>
    %15 = vector.broadcast %14 : vector<1x8x16xf32> to vector<2x8x16xf32>
    %16 = arith.addf %13, %15 : vector<2x8x16xf32>
    %c0_17 = arith.constant 0 : index
    %c0_18 = arith.constant 0 : index
    %c0_19 = arith.constant 0 : index
    %17 = vector.load %arg8[%c0_17, %c0_18, %c0_19] : memref<2x8x1xf32, #tpu.memory_space<vmem>>, vector<2x8x1xf32>
    %cst_20 = arith.constant dense<0xFF800000> : vector<2x8xf32>
    %18 = vector.multi_reduction <maximumf>, %16, %cst_20 [2] : vector<2x8x16xf32> to vector<2x8xf32>
    %19 = vector.shape_cast %18 : vector<2x8xf32> to vector<2x8x1xf32>
    %20 = arith.maximumf %17, %19 : vector<2x8x1xf32>
    %21 = arith.subf %17, %20 : vector<2x8x1xf32>
    %22 = math.exp %21 : vector<2x8x1xf32>
    %23 = vector.broadcast %20 : vector<2x8x1xf32> to vector<2x8x16xf32>
    %24 = arith.subf %16, %23 : vector<2x8x16xf32>
    %25 = math.exp %24 : vector<2x8x16xf32>
    %c0_21 = arith.constant 0 : index
    %c0_22 = arith.constant 0 : index
    %c0_23 = arith.constant 0 : index
    %26 = vector.load %arg9[%c0_21, %c0_22, %c0_23] : memref<2x8x1xf32, #tpu.memory_space<vmem>>, vector<2x8x1xf32>
    %27 = arith.mulf %22, %26 : vector<2x8x1xf32>
    %cst_24 = arith.constant dense<0.000000e+00> : vector<2x8xf32>
    %28 = vector.multi_reduction <add>, %25, %cst_24 [2] : vector<2x8x16xf32> to vector<2x8xf32>
    %29 = vector.shape_cast %28 : vector<2x8xf32> to vector<2x8x1xf32>
    %30 = arith.addf %27, %29 : vector<2x8x1xf32>
    %c0_25 = arith.constant 0 : index
    %c0_26 = arith.constant 0 : index
    %c0_27 = arith.constant 0 : index
    %31 = vector.load %arg9[%c0_25, %c0_26, %c0_27] : memref<2x8x1xf32, #tpu.memory_space<vmem>>, vector<2x8x1xf32>
    tpu.vector_store %arg9[%c0_25, %c0_26, %c0_27], %30 {strides = array<i32>} : memref<2x8x1xf32, #tpu.memory_space<vmem>>, vector<2x8x1xf32>,
    %c0_28 = arith.constant 0 : index
    %c0_29 = arith.constant 0 : index
    %c0_30 = arith.constant 0 : index
    %32 = vector.load %arg10[%c0_28, %c0_29, %c0_30] : memref<2x8x8xf32, #tpu.memory_space<vmem>>, vector<2x8x8xf32>
    %33 = vector.broadcast %22 : vector<2x8x1xf32> to vector<2x8x8xf32>
    %34 = arith.mulf %33, %32 : vector<2x8x8xf32>
    %35 = arith.truncf %25 : vector<2x8x16xf32> to vector<2x8x16xbf16>
    "tpu.trace_start"() <{level = 10 : i32, message = "rst,td->rsd"}> : () -> ()
    %cst_31 = arith.constant dense<0.000000e+00> : vector<2x8x8xf32>
    %36 = tpu.matmul %35, %8, %cst_31 {dimension_numbers = #tpu.dot_dimension_numbers<[2], [0], [0, 1], [1], [0, 0, 0, 1, 1, 1], [], []>} : vector<2x8x16xbf16>, vector<16x8xbf16>, vector<2x8x8xf32> -> vector<2x8x8xf32>
    "tpu.trace_stop"() : () -> ()
    %37 = arith.addf %34, %36 : vector<2x8x8xf32>
    %c0_32 = arith.constant 0 : index
    %c0_33 = arith.constant 0 : index
    %c0_34 = arith.constant 0 : index
    %38 = vector.load %arg10[%c0_32, %c0_33, %c0_34] : memref<2x8x8xf32, #tpu.memory_space<vmem>>, vector<2x8x8xf32>
    tpu.vector_store %arg10[%c0_32, %c0_33, %c0_34], %37 {strides = array<i32>} : memref<2x8x8xf32, #tpu.memory_space<vmem>>, vector<2x8x8xf32>,
    %c0_35 = arith.constant 0 : index
    %c0_36 = arith.constant 0 : index
    %c0_37 = arith.constant 0 : index
    %39 = vector.load %arg8[%c0_35, %c0_36, %c0_37] : memref<2x8x1xf32, #tpu.memory_space<vmem>>, vector<2x8x1xf32>
    tpu.vector_store %arg8[%c0_35, %c0_36, %c0_37], %20 {strides = array<i32>} : memref<2x8x1xf32, #tpu.memory_space<vmem>>, vector<2x8x1xf32>,
    %c0_i32_38 = arith.constant 0 : i32
    %40 = arith.cmpi eq, %arg2, %c0_i32_38 : i32
    %41 = arith.extui %40 : i1 to i32
    %c0_i32_39 = arith.constant 0 : i32
    %42 = arith.cmpi ne, %41, %c0_i32_39 : i32
    scf.if %42 {
      %c0_40 = arith.constant 0 : index
      %c0_41 = arith.constant 0 : index
      %c0_42 = arith.constant 0 : index
      %43 = vector.load %arg10[%c0_40, %c0_41, %c0_42] : memref<2x8x8xf32, #tpu.memory_space<vmem>>, vector<2x8x8xf32>
      %c0_43 = arith.constant 0 : index
      %c0_44 = arith.constant 0 : index
      %c0_45 = arith.constant 0 : index
      %44 = vector.load %arg9[%c0_43, %c0_44, %c0_45] : memref<2x8x1xf32, #tpu.memory_space<vmem>>, vector<2x8x1xf32>
      %45 = tpu.reciprocal %44 {approx = true} : vector<2x8x1xf32> -> vector<2x8x1xf32>
      %46 = vector.broadcast %45 : vector<2x8x1xf32> to vector<2x8x8xf32>
      %47 = arith.mulf %43, %46 : vector<2x8x8xf32>
      %48 = arith.truncf %47 : vector<2x8x8xf32> to vector<2x8x8xbf16>
      %c0_46 = arith.constant 0 : index
      %c0_47 = arith.constant 0 : index
      %c0_48 = arith.constant 0 : index
      %c0_49 = arith.constant 0 : index
      %49 = vector.load %arg7[%c0_46, %c0_47, %c0_48, %c0_49] : memref<1x2x8x8xbf16, #tpu.memory_space<vmem>>, vector<1x2x8x8xbf16>
      %50 = vector.shape_cast %49 : vector<1x2x8x8xbf16> to vector<2x8x8xbf16>
      %51 = vector.shape_cast %48 : vector<2x8x8xbf16> to vector<1x2x8x8xbf16>
      tpu.vector_store %arg7[%c0_46, %c0_47, %c0_48, %c0_49], %51 {strides = array<i32>} : memref<1x2x8x8xbf16, #tpu.memory_space<vmem>>, vector<1x2x8x8xbf16>,
    } else {
    }
    return
  }
  func.func @transform_0(%arg0: i32, %arg1: i32, %arg2: i32) -> (i32, i32, i32, i32) {
    %c0_i32 = arith.constant 0 : i32
    %c0_i32_0 = arith.constant 0 : i32
    %c0_i32_1 = arith.constant 0 : i32
    return %arg0, %arg1, %c0_i32, %c0_i32_0 : i32, i32, i32, i32
  }
  func.func @transform_1(%arg0: i32, %arg1: i32, %arg2: i32) -> (i32, i32, i32, i32) {
    %c0_i32 = arith.constant 0 : i32
    %c0_i32_0 = arith.constant 0 : i32
    return %arg0, %arg1, %arg2, %c0_i32 : i32, i32, i32, i32
  }
  func.func @transform_2(%arg0: i32, %arg1: i32, %arg2: i32) -> (i32, i32, i32, i32) {
    %c0_i32 = arith.constant 0 : i32
    %c0_i32_0 = arith.constant 0 : i32
    return %arg0, %arg1, %arg2, %c0_i32 : i32, i32, i32, i32
  }
  func.func @transform_3(%arg0: i32, %arg1: i32, %arg2: i32) -> (i32, i32, i32, i32) {
    %c0_i32 = arith.constant 0 : i32
    %c0_i32_0 = arith.constant 0 : i32
    %c0_i32_1 = arith.constant 0 : i32
    %c0_i32_2 = arith.constant 0 : i32
    return %c0_i32, %c0_i32_0, %c0_i32_1, %arg2 : i32, i32, i32, i32
  }
  func.func @transform_4(%arg0: i32, %arg1: i32, %arg2: i32) -> (i32, i32, i32, i32) {
    %c0_i32 = arith.constant 0 : i32
    %c0_i32_0 = arith.constant 0 : i32
    %c0_i32_1 = arith.constant 0 : i32
    return %arg0, %arg1, %c0_i32, %c0_i32_0 : i32, i32, i32, i32
  }
}

module attributes {stable_mosaic.version = 11 : i64} {
  func.func @_mlp_kernel(%arg0: i32, %arg1: i32, %arg2: memref<16x32xbf16, #tpu.memory_space<vmem>>, %arg3: memref<32x128xbf16, #tpu.memory_space<vmem>>, %arg4: memref<32x128xbf16, #tpu.memory_space<vmem>>, %arg5: memref<128x32xbf16, #tpu.memory_space<vmem>>, %arg6: memref<16x32xbf16, #tpu.memory_space<vmem>>, %arg7: memref<16x32xf32, #tpu.memory_space<vmem>>) attributes {dimension_semantics = [#tpu.dimension_semantics<parallel>, #tpu.dimension_semantics<arbitrary>], iteration_bounds = array<i64: 1, 1>, scalar_prefetch = 0 : i64, scratch_operands = 1 : i64, tpu.core_type = #tpu.core_type<tc>, window_params = [{transform_indices = @transform_0, window_bounds = array<i64: 16, 32>}, {transform_indices = @transform_1, window_bounds = array<i64: 32, 128>}, {transform_indices = @transform_2, window_bounds = array<i64: 32, 128>}, {transform_indices = @transform_3, window_bounds = array<i64: 128, 32>}, {transform_indices = @transform_4, window_bounds = array<i64: 16, 32>}]} {
    %c0_i32 = arith.constant 0 : i32
    %0 = arith.cmpi eq, %arg1, %c0_i32 : i32
    %1 = arith.extui %0 : i1 to i32
    %c0_i32_0 = arith.constant 0 : i32
    %2 = arith.cmpi ne, %1, %c0_i32_0 : i32
    scf.if %2 {
      %cst_20 = arith.constant 0.000000e+00 : f32
      %31 = vector.broadcast %cst_20 : f32 to vector<16x32xf32>
      %c0_21 = arith.constant 0 : index
      %c0_22 = arith.constant 0 : index
      %32 = vector.load %arg7[%c0_21, %c0_22] : memref<16x32xf32, #tpu.memory_space<vmem>>, vector<16x32xf32>
      tpu.vector_store %arg7[%c0_21, %c0_22], %31 {strides = array<i32>} : memref<16x32xf32, #tpu.memory_space<vmem>>, vector<16x32xf32>,
    } else {
    }
    %c0 = arith.constant 0 : index
    %c0_1 = arith.constant 0 : index
    %3 = vector.load %arg2[%c0, %c0_1] : memref<16x32xbf16, #tpu.memory_space<vmem>>, vector<16x32xbf16>
    %c0_2 = arith.constant 0 : index
    %c0_3 = arith.constant 0 : index
    %4 = vector.load %arg3[%c0_2, %c0_3] : memref<32x128xbf16, #tpu.memory_space<vmem>>, vector<32x128xbf16>
    %cst = arith.constant dense<0.000000e+00> : vector<16x128xf32>
    %5 = tpu.matmul %3, %4, %cst {dimension_numbers = #tpu.dot_dimension_numbers<[1], [0], [0], [1], [0, 0, 1, 1], [], []>} : vector<16x32xbf16>, vector<32x128xbf16>, vector<16x128xf32> -> vector<16x128xf32>
    %c0_4 = arith.constant 0 : index
    %c0_5 = arith.constant 0 : index
    %6 = vector.load %arg4[%c0_4, %c0_5] : memref<32x128xbf16, #tpu.memory_space<vmem>>, vector<32x128xbf16>
    %cst_6 = arith.constant dense<0.000000e+00> : vector<16x128xf32>
    %7 = tpu.matmul %3, %6, %cst_6 {dimension_numbers = #tpu.dot_dimension_numbers<[1], [0], [0], [1], [0, 0, 1, 1], [], []>} : vector<16x32xbf16>, vector<32x128xbf16>, vector<16x128xf32> -> vector<16x128xf32>
    %8 = arith.mulf %5, %5 : vector<16x128xf32>
    %9 = arith.mulf %5, %8 : vector<16x128xf32>
    %cst_7 = arith.constant 4.471500e-02 : f32
    %10 = vector.broadcast %cst_7 : f32 to vector<16x128xf32>
    %11 = arith.mulf %10, %9 : vector<16x128xf32>
    %12 = arith.addf %5, %11 : vector<16x128xf32>
    %cst_8 = arith.constant 0.797884583 : f32
    %13 = vector.broadcast %cst_8 : f32 to vector<16x128xf32>
    %14 = arith.mulf %13, %12 : vector<16x128xf32>
    %15 = math.tanh %14 : vector<16x128xf32>
    %cst_9 = arith.constant 1.000000e+00 : f32
    %16 = vector.broadcast %cst_9 : f32 to vector<16x128xf32>
    %17 = arith.addf %16, %15 : vector<16x128xf32>
    %cst_10 = arith.constant 5.000000e-01 : f32
    %18 = vector.broadcast %cst_10 : f32 to vector<16x128xf32>
    %19 = arith.mulf %18, %17 : vector<16x128xf32>
    %20 = arith.mulf %5, %19 : vector<16x128xf32>
    %21 = arith.mulf %20, %7 : vector<16x128xf32>
    %c0_11 = arith.constant 0 : index
    %c0_12 = arith.constant 0 : index
    %22 = vector.load %arg7[%c0_11, %c0_12] : memref<16x32xf32, #tpu.memory_space<vmem>>, vector<16x32xf32>
    %23 = arith.truncf %21 : vector<16x128xf32> to vector<16x128xbf16>
    %c0_13 = arith.constant 0 : index
    %c0_14 = arith.constant 0 : index
    %24 = vector.load %arg5[%c0_13, %c0_14] : memref<128x32xbf16, #tpu.memory_space<vmem>>, vector<128x32xbf16>
    %cst_15 = arith.constant dense<0.000000e+00> : vector<16x32xf32>
    %25 = tpu.matmul %23, %24, %cst_15 {dimension_numbers = #tpu.dot_dimension_numbers<[1], [0], [0], [1], [0, 0, 1, 1], [], []>} : vector<16x128xbf16>, vector<128x32xbf16>, vector<16x32xf32> -> vector<16x32xf32>
    %26 = arith.addf %22, %25 : vector<16x32xf32>
    %c0_16 = arith.constant 0 : index
    %c0_17 = arith.constant 0 : index
    %27 = vector.load %arg7[%c0_16, %c0_17] : memref<16x32xf32, #tpu.memory_space<vmem>>, vector<16x32xf32>
    tpu.vector_store %arg7[%c0_16, %c0_17], %26 {strides = array<i32>} : memref<16x32xf32, #tpu.memory_space<vmem>>, vector<16x32xf32>,
    %c0_i32_18 = arith.constant 0 : i32
    %28 = arith.cmpi eq, %arg1, %c0_i32_18 : i32
    %29 = arith.extui %28 : i1 to i32
    %c0_i32_19 = arith.constant 0 : i32
    %30 = arith.cmpi ne, %29, %c0_i32_19 : i32
    scf.if %30 {
      %c0_20 = arith.constant 0 : index
      %c0_21 = arith.constant 0 : index
      %31 = vector.load %arg7[%c0_20, %c0_21] : memref<16x32xf32, #tpu.memory_space<vmem>>, vector<16x32xf32>
      %32 = arith.truncf %31 : vector<16x32xf32> to vector<16x32xbf16>
      %c0_22 = arith.constant 0 : index
      %c0_23 = arith.constant 0 : index
      %33 = vector.load %arg6[%c0_22, %c0_23] : memref<16x32xbf16, #tpu.memory_space<vmem>>, vector<16x32xbf16>
      tpu.vector_store %arg6[%c0_22, %c0_23], %32 {strides = array<i32>} : memref<16x32xbf16, #tpu.memory_space<vmem>>, vector<16x32xbf16>,
    } else {
    }
    return
  }
  func.func @transform_0(%arg0: i32, %arg1: i32) -> (i32, i32) {
    %c0_i32 = arith.constant 0 : i32
    %c0_i32_0 = arith.constant 0 : i32
    return %arg0, %c0_i32 : i32, i32
  }
  func.func @transform_1(%arg0: i32, %arg1: i32) -> (i32, i32) {
    %c0_i32 = arith.constant 0 : i32
    %c0_i32_0 = arith.constant 0 : i32
    return %c0_i32, %arg1 : i32, i32
  }
  func.func @transform_2(%arg0: i32, %arg1: i32) -> (i32, i32) {
    %c0_i32 = arith.constant 0 : i32
    %c0_i32_0 = arith.constant 0 : i32
    return %c0_i32, %arg1 : i32, i32
  }
  func.func @transform_3(%arg0: i32, %arg1: i32) -> (i32, i32) {
    %c0_i32 = arith.constant 0 : i32
    %c0_i32_0 = arith.constant 0 : i32
    return %arg1, %c0_i32 : i32, i32
  }
  func.func @transform_4(%arg0: i32, %arg1: i32) -> (i32, i32) {
    %c0_i32 = arith.constant 0 : i32
    %c0_i32_0 = arith.constant 0 : i32
    return %arg0, %c0_i32 : i32, i32
  }
}

module attributes {stable_mosaic.version = 11 : i64} {
  func.func @_lmhead_argmax_kernel(%arg0: i32, %arg1: memref<2x32xbf16, #tpu.memory_space<vmem>>, %arg2: memref<32x128xbf16, #tpu.memory_space<vmem>>, %arg3: memref<2x1xi32, #tpu.memory_space<vmem>>, %arg4: memref<2x1xf32, #tpu.memory_space<vmem>>) attributes {dimension_semantics = [#tpu.dimension_semantics<arbitrary>], iteration_bounds = array<i64: 1>, scalar_prefetch = 0 : i64, scratch_operands = 1 : i64, tpu.core_type = #tpu.core_type<tc>, window_params = [{pipeline_mode = #tpu.pipeline_mode<synchronous>, transform_indices = @transform_0, window_bounds = array<i64: 2, 32>}, {transform_indices = @transform_1, window_bounds = array<i64: 32, 128>}, {pipeline_mode = #tpu.pipeline_mode<synchronous>, transform_indices = @transform_2, window_bounds = array<i64: 2, 1>}]} {
    %c0_i32 = arith.constant 0 : i32
    %0 = arith.cmpi eq, %arg0, %c0_i32 : i32
    %1 = arith.extui %0 : i1 to i32
    %c0_i32_0 = arith.constant 0 : i32
    %2 = arith.cmpi ne, %1, %c0_i32_0 : i32
    scf.if %2 {
      %cst_17 = arith.constant 0xFF800000 : f32
      %30 = vector.broadcast %cst_17 : f32 to vector<2x1xf32>
      %c0_18 = arith.constant 0 : index
      %c0_19 = arith.constant 0 : index
      %31 = vector.load %arg4[%c0_18, %c0_19] : memref<2x1xf32, #tpu.memory_space<vmem>>, vector<2x1xf32>
      tpu.vector_store %arg4[%c0_18, %c0_19], %30 {strides = array<i32>} : memref<2x1xf32, #tpu.memory_space<vmem>>, vector<2x1xf32>,
      %c0_i32_20 = arith.constant 0 : i32
      %32 = vector.broadcast %c0_i32_20 : i32 to vector<2x1xi32>
      %c0_21 = arith.constant 0 : index
      %c0_22 = arith.constant 0 : index
      %33 = vector.load %arg3[%c0_21, %c0_22] : memref<2x1xi32, #tpu.memory_space<vmem>>, vector<2x1xi32>
      tpu.vector_store %arg3[%c0_21, %c0_22], %32 {strides = array<i32>} : memref<2x1xi32, #tpu.memory_space<vmem>>, vector<2x1xi32>,
    } else {
    }
    %c0 = arith.constant 0 : index
    %c0_1 = arith.constant 0 : index
    %3 = vector.load %arg1[%c0, %c0_1] : memref<2x32xbf16, #tpu.memory_space<vmem>>, vector<2x32xbf16>
    %c0_2 = arith.constant 0 : index
    %c0_3 = arith.constant 0 : index
    %4 = vector.load %arg2[%c0_2, %c0_3] : memref<32x128xbf16, #tpu.memory_space<vmem>>, vector<32x128xbf16>
    %cst = arith.constant dense<0.000000e+00> : vector<2x128xf32>
    %5 = tpu.matmul %3, %4, %cst {dimension_numbers = #tpu.dot_dimension_numbers<[1], [0], [0], [1], [0, 0, 1, 1], [], []>} : vector<2x32xbf16>, vector<32x128xbf16>, vector<2x128xf32> -> vector<2x128xf32>
    %6 = tpu.iota {dimensions = array<i32: 1>} : vector<2x128xi32>
    %c128_i32 = arith.constant 128 : i32
    %7 = arith.muli %arg0, %c128_i32 : i32
    %8 = vector.broadcast %7 : i32 to vector<2x128xi32>
    %9 = arith.addi %6, %8 : vector<2x128xi32>
    %c64_i32 = arith.constant 64 : i32
    %10 = vector.broadcast %c64_i32 : i32 to vector<2x128xi32>
    %11 = arith.cmpi slt, %9, %10 : vector<2x128xi32>
    %cst_4 = arith.constant 0xFF800000 : f32
    %12 = vector.broadcast %cst_4 : f32 to vector<2x128xf32>
    %13 = arith.select %11, %5, %12 : vector<2x128xi1>, vector<2x128xf32>
    %cst_5 = arith.constant dense<0xFF800000> : vector<2xf32>
    %14 = vector.multi_reduction <maximumf>, %13, %cst_5 [1] : vector<2x128xf32> to vector<2xf32>
    %15 = vector.shape_cast %14 : vector<2xf32> to vector<2x1xf32>
    %16 = vector.broadcast %15 : vector<2x1xf32> to vector<2x128xf32>
    %17 = arith.cmpf oeq, %13, %16 : vector<2x128xf32>
    %c1073741824_i32 = arith.constant 1073741824 : i32
    %18 = vector.broadcast %c1073741824_i32 : i32 to vector<2x128xi32>
    %19 = arith.select %17, %9, %18 : vector<2x128xi1>, vector<2x128xi32>
    %cst_6 = arith.constant dense<2147483647> : vector<2xi32>
    %20 = vector.multi_reduction <minsi>, %19, %cst_6 [1] : vector<2x128xi32> to vector<2xi32>
    %21 = vector.shape_cast %20 : vector<2xi32> to vector<2x1xi32>
    %c0_7 = arith.constant 0 : index
    %c0_8 = arith.constant 0 : index
    %22 = vector.load %arg4[%c0_7, %c0_8] : memref<2x1xf32, #tpu.memory_space<vmem>>, vector<2x1xf32>
    %23 = arith.cmpf ogt, %15, %22 : vector<2x1xf32>
    %c0_9 = arith.constant 0 : index
    %c0_10 = arith.constant 0 : index
    %24 = vector.load %arg3[%c0_9, %c0_10] : memref<2x1xi32, #tpu.memory_space<vmem>>, vector<2x1xi32>
    %25 = arith.select %23, %21, %24 : vector<2x1xi1>, vector<2x1xi32>
    %c0_11 = arith.constant 0 : index
    %c0_12 = arith.constant 0 : index
    %26 = vector.load %arg3[%c0_11, %c0_12] : memref<2x1xi32, #tpu.memory_space<vmem>>, vector<2x1xi32>
    tpu.vector_store %arg3[%c0_11, %c0_12], %25 {strides = array<i32>} : memref<2x1xi32, #tpu.memory_space<vmem>>, vector<2x1xi32>,
    %c0_13 = arith.constant 0 : index
    %c0_14 = arith.constant 0 : index
    %27 = vector.load %arg4[%c0_13, %c0_14] : memref<2x1xf32, #tpu.memory_space<vmem>>, vector<2x1xf32>
    %28 = arith.maximumf %27, %15 : vector<2x1xf32>
    %c0_15 = arith.constant 0 : index
    %c0_16 = arith.constant 0 : index
    %29 = vector.load %arg4[%c0_15, %c0_16] : memref<2x1xf32, #tpu.memory_space<vmem>>, vector<2x1xf32>
    tpu.vector_store %arg4[%c0_15, %c0_16], %28 {strides = array<i32>} : memref<2x1xf32, #tpu.memory_space<vmem>>, vector<2x1xf32>,
    return
  }
  func.func @transform_0(%arg0: i32) -> (i32, i32) {
    %c0_i32 = arith.constant 0 : i32
    %c0_i32_0 = arith.constant 0 : i32
    %c0_i32_1 = arith.constant 0 : i32
    return %c0_i32, %c0_i32_0 : i32, i32
  }
  func.func @transform_1(%arg0: i32) -> (i32, i32) {
    %c0_i32 = arith.constant 0 : i32
    %c0_i32_0 = arith.constant 0 : i32
    return %c0_i32, %arg0 : i32, i32
  }
  func.func @transform_2(%arg0: i32) -> (i32, i32) {
    %c0_i32 = arith.constant 0 : i32
    %c0_i32_0 = arith.constant 0 : i32
    %c0_i32_1 = arith.constant 0 : i32
    return %c0_i32, %c0_i32_0 : i32, i32
  }
}

</mosaic_0001>

<llo_original>
// kernel: run.15
$region0: #{run.15}
  #allocation0 [shape = 'u32[]', space=smem, size = 0x4, offset = 0x4, fixed_abs, tag = 'smem constant byte address 0x4 - core index']
  #allocation1 [shape = 'u32[72,128]{1,0:T(1,128)}', space=vmem, size = 0x9000, scoped, tag = 'internal scratch']
  #allocation2 [shape = 'f32[16,128]{1,0:T(8,128)}', space=vmem, size = 0x2000, scoped, tag = 'scratch operand']
  %s0 = inlined_call_operand.vmem [shape: bf16[16,128], index: 0, kind: input, shape index: {}]
  %s1 = inlined_call_operand.vmem [shape: bf16[128,128], index: 1, kind: input, shape index: {}]
  %s2 = inlined_call_operand.vmem [shape: bf16[16,128], index: 2, kind: output, shape index: {}]
  %s3 = sld [smem:[#allocation0]]
  $region26: #{run.15} parent=0
    _
  %s5 = ssub.s32 1, %s3
  %s6 = scalar_select 0, %s5, %s3
  // Predicated region
  $region2: #{run.15} parent=0 // pred_check
    _
  $region3: #{run.15} parent=0 // pred_check_branch
    %8 = sbr.rel (0) target = $region5
  $region4: #{run.15} parent=0 // pred_region
    _
  $region5: #{run.15} parent=0 // pred_fallthru
    _
  // Predicated region
  $region6: #{run.15} parent=0 // pred_check
    _
  $region7: #{run.15} parent=0 // pred_check_branch
    %10 = sbr.rel (0) target = $region9
  $region8: #{run.15} parent=0 // pred_region
    _
  $region9: #{run.15} parent=0 // pred_fallthru
    _
  %p11 = scmp.eq.s32.totalorder 0, 0
  // Predicated region
  $region10: #{run.15} parent=0 // pred_check
    %p12 = pneg %p11
  $region11: #{run.15} parent=0 // pred_check_branch
    %14 = sbr.rel (%p12) target = $region13
  $region12: #{run.15} parent=0 // pred_region
    %15 = vst [vmem:[#allocation2] sm:$0xff] 0.0
    %16 = vst [vmem:[#allocation2 + $0x8] sm:$0xff] 0.0
  $region13: #{run.15} parent=0 // pred_fallthru
    _
  %v17 = vld [vmem:[#allocation2] sm:$0xff]
  %v18 = vld [vmem:[#allocation2 + $0x8] sm:$0xff]
  %v19 = vld [vmem:[%s0] sm:$0xf]
  %v20 = vld [vmem:[%s0 + $0x4] sm:$0xf]
  %v21 = vld [vmem:[%s1] sm:$0xf]
  %v22 = vld [vmem:[%s1 + $0x4] sm:$0xf]
  %v23 = vld [vmem:[%s1 + $0x8] sm:$0xf]
  %v24 = vld [vmem:[%s1 + $0xc] sm:$0xf]
  %v25 = vld [vmem:[%s1 + $0x10] sm:$0xf]
  %v26 = vld [vmem:[%s1 + $0x14] sm:$0xf]
  %v27 = vld [vmem:[%s1 + $0x18] sm:$0xf]
  %v28 = vld [vmem:[%s1 + $0x1c] sm:$0xf]
  %v29 = vld [vmem:[%s1 + $0x20] sm:$0xf]
  %v30 = vld [vmem:[%s1 + $0x24] sm:$0xf]
  %v31 = vld [vmem:[%s1 + $0x28] sm:$0xf]
  %v32 = vld [vmem:[%s1 + $0x2c] sm:$0xf]
  %v33 = vld [vmem:[%s1 + $0x30] sm:$0xf]
  %v34 = vld [vmem:[%s1 + $0x34] sm:$0xf]
  %v35 = vld [vmem:[%s1 + $0x38] sm:$0xf]
  %v36 = vld [vmem:[%s1 + $0x3c] sm:$0xf]
  %v39 = vunpack.c.l.b16 %v19
  %v40 = vunpack.c.l.b16 %v20
  %v41 = vpack.c.b16 %v40, %v39
  %v59 = vunpack.c.l.b16 %v21
  %v60 = vunpack.c.l.b16 %v22
  %v61 = vunpack.c.l.b16 %v23
  %v62 = vunpack.c.l.b16 %v24
  %v63 = vunpack.c.l.b16 %v25
  %v64 = vunpack.c.l.b16 %v26
  %v65 = vunpack.c.l.b16 %v27
  %v66 = vunpack.c.l.b16 %v28
  %v67 = vunpack.c.l.b16 %v29
  %v68 = vunpack.c.l.b16 %v30
  %v69 = vunpack.c.l.b16 %v31
  %v70 = vunpack.c.l.b16 %v32
  %v71 = vunpack.c.l.b16 %v33
  %v72 = vunpack.c.l.b16 %v34
  %v73 = vunpack.c.l.b16 %v35
  %v74 = vunpack.c.l.b16 %v36
  %v75 = vpack.c.b16 %v60, %v59
  %v76 = vpack.c.b16 %v62, %v61
  %v77 = vpack.c.b16 %v64, %v63
  %v78 = vpack.c.b16 %v66, %v65
  %v79 = vpack.c.b16 %v68, %v67
  %v80 = vpack.c.b16 %v70, %v69
  %v81 = vpack.c.b16 %v72, %v71
  %v82 = vpack.c.b16 %v74, %v73
  %91 = vmatpush.bf16.msra.mxu0 %v82
  %92 = vmatpush.bf16.msra.mxu0 %v81
  %93 = vmatpush.bf16.msra.mxu0 %v80
  %94 = vmatpush.bf16.msra.mxu0 %v79
  %95 = vmatpush.bf16.msra.mxu0 %v78
  %96 = vmatpush.bf16.msra.mxu0 %v77
  %97 = vmatpush.bf16.msra.mxu0 %v76
  %98 = vmatpush.bf16.msra.mxu0 %v75
  %99 = vmatmul.bf16.gmra.mxu0 %v41
  %v100 = vpop.f32.mrf.mxu0
  %v101 = vadd.f32 0.0, %v100
  %v102 = vpop.f32.mrf.mxu0
  %v103 = vadd.f32 0.0, %v102
  %104 = vdwg.mxu0
  %v105 = vadd.f32 %v17, %v101
  %v106 = vadd.f32 %v18, %v103
  %107 = vst [vmem:[#allocation2] sm:$0xff] %v105
  %108 = vst [vmem:[#allocation2 + $0x8] sm:$0xff] %v106
  // Predicated region
  $region14: #{run.15} parent=0 // pred_check
    %p109 = pneg %p11
  $region15: #{run.15} parent=0 // pred_check_branch
    %111 = sbr.rel (%p109) target = $region17
  $region16: #{run.15} parent=0 // pred_region
    %v112 = vld [vmem:[#allocation2] sm:$0xff]
    %v113 = vld [vmem:[#allocation2 + $0x8] sm:$0xff]
    %v114 = vpack.c.bf16 %v112, %v112
    %v115 = vpack.c.bf16 %v113, %v113
    %116 = vst [vmem:[%s2] sm:$0xf] %v114
    %117 = vst [vmem:[%s2 + $0x4] sm:$0xf] %v115
  $region17: #{run.15} parent=0 // pred_fallthru
    _
  // Predicated region
  $region18: #{run.15} parent=0 // pred_check
    _
  $region19: #{run.15} parent=0 // pred_check_branch
    %119 = sbr.rel (0) target = $region21
  $region20: #{run.15} parent=0 // pred_region
    _
  $region21: #{run.15} parent=0 // pred_fallthru
    _
  // Predicated region
  $region22: #{run.15} parent=0 // pred_check
    _
  $region23: #{run.15} parent=0 // pred_check_branch
    %121 = sbr.rel (0) target = $region25
  $region24: #{run.15} parent=0 // pred_region
    _
  $region25: #{run.15} parent=0 // pred_fallthru
    _

// kernel: run.14
$region0: #{run.14}
  #allocation0 [shape = 'u32[]', space=smem, size = 0x4, offset = 0x4, fixed_abs, tag = 'smem constant byte address 0x4 - core index']
  #allocation1 [shape = 'u32[72,128]{1,0:T(1,128)}', space=vmem, size = 0x9000, scoped, tag = 'internal scratch']
  %s0 = inlined_call_operand.vmem [shape: bf16[16,32], index: 0, kind: input, shape index: {}]
  %s1 = inlined_call_operand.vmem [shape: f32[1,32], index: 1, kind: input, shape index: {}]
  %s2 = inlined_call_operand.vmem [shape: bf16[16,32], index: 2, kind: output, shape index: {}]
  %s3 = sld [smem:[#allocation0]]
  $region18: #{run.14} parent=0
    _
  %s5 = ssub.s32 1, %s3
  %s6 = scalar_select 0, %s5, %s3
  // Predicated region
  $region2: #{run.14} parent=0 // pred_check
    _
  $region3: #{run.14} parent=0 // pred_check_branch
    %8 = sbr.rel (0) target = $region5
  $region4: #{run.14} parent=0 // pred_region
    _
  $region5: #{run.14} parent=0 // pred_fallthru
    _
  // Predicated region
  $region6: #{run.14} parent=0 // pred_check
    _
  $region7: #{run.14} parent=0 // pred_check_branch
    %10 = sbr.rel (0) target = $region9
  $region8: #{run.14} parent=0 // pred_region
    _
  $region9: #{run.14} parent=0 // pred_fallthru
    _
  %v11 = vld [vmem:[%s0] sm:$0xf]
  %v12 = vld [vmem:[%s0 + $0x4] sm:$0xf]
  %v13 = vunpack.c.l.bf16 %v11
  %v14 = vunpack.c.l.bf16 %v12
  %v15 = vmul.f32 %v13, %v13
  %v16 = vmul.f32 %v14, %v14
  %vm17 = vcmask 261120
  %v18 = vsel %vm17, %v15, 0.0
  %19 = vadd.xlane.f32.xlu0 %v18
  %v20 = vpop.xlane.xlu0 %19
  %v21 = vsel %vm17, %v16, 0.0
  %22 = vadd.xlane.f32.xlu0 %v21
  %v23 = vpop.xlane.xlu0 %22
  %v24 = vrcp.pop 32.0
  %v25 = vmul.f32 32.0, %v24
  %v26 = vsub.f32 1.0, %v25
  %v27 = vmul.f32 %v24, %v26
  %v28 = vadd.f32 %v24, %v27
  %vm29 = vweird.f32 %v24
  %v30 = vsel %vm29, %v24, %v28
  %v31 = vmul.f32 %v20, %v30
  %v32 = vmul.f32 %v23, %v30
  %v33 = vadd.f32 %v31, 1e-06
  %v34 = vadd.f32 %v32, 1e-06
  %v35 = vrsqrt.pop %v33
  %v36 = vmul.f32 %v35, %v33
  %v37 = vmul.f32 %v36, %v35
  %v38 = vmul.f32 0.5, %v37
  %v39 = vsub.f32 1.5, %v38
  %v40 = vmul.f32 %v35, %v39
  %vm41 = vweird.f32 %v33
  %vm42 = vweird.f32 %v35
  %vm43 = vmor %vm41, %vm42
  %v44 = vsel %vm43, %v35, %v40
  %v45 = vrsqrt.pop %v34
  %v46 = vmul.f32 %v45, %v34
  %v47 = vmul.f32 %v46, %v45
  %v48 = vmul.f32 0.5, %v47
  %v49 = vsub.f32 1.5, %v48
  %v50 = vmul.f32 %v45, %v49
  %vm51 = vweird.f32 %v34
  %vm52 = vweird.f32 %v45
  %vm53 = vmor %vm51, %vm52
  %v54 = vsel %vm53, %v45, %v50
  %v55 = vmul.f32 %v13, %v44
  %v56 = vmul.f32 %v14, %v54
  %v57 = vld [vmem:[%s1] sm:$0x1]
  %v58 = vadd.f32 %v57, 1.0
  %v60 = vperm.slane %v58, 0
  %v62 = vmul.f32 %v55, %v60
  %v63 = vmul.f32 %v56, %v60
  %v64 = vpack.c.bf16 %v62, %v62
  %v65 = vpack.c.bf16 %v63, %v63
  %vm66 = vcmask 257024
  %67 = vst.msk [vmem:[%s2] sm:$0xf] %vm66, %v64
  %68 = vst.msk [vmem:[%s2 + $0x4] sm:$0xf] %vm66, %v65
  // Predicated region
  $region10: #{run.14} parent=0 // pred_check
    _
  $region11: #{run.14} parent=0 // pred_check_branch
    %70 = sbr.rel (0) target = $region13
  $region12: #{run.14} parent=0 // pred_region
    _
  $region13: #{run.14} parent=0 // pred_fallthru
    _
  // Predicated region
  $region14: #{run.14} parent=0 // pred_check
    _
  $region15: #{run.14} parent=0 // pred_check_branch
    %72 = sbr.rel (0) target = $region17
  $region16: #{run.14} parent=0 // pred_region
    _
  $region17: #{run.14} parent=0 // pred_fallthru
    _

// kernel: run.16
$region0: #{run.16}
  #allocation0 [shape = 'u32[]', space=smem, size = 0x4, offset = 0x4, fixed_abs, tag = 'smem constant byte address 0x4 - core index']
  #allocation1 [shape = 'u32[72,128]{1,0:T(1,128)}', space=vmem, size = 0x9000, scoped, tag = 'internal scratch']
  #allocation2 [shape = 'f32[2,8,1]{2,1,0:T(8,128)}', space=vmem, size = 0x2000, scoped, tag = 'scratch operand']
  #allocation3 [shape = 'f32[2,8,1]{2,1,0:T(8,128)}', space=vmem, size = 0x2000, scoped, tag = 'scratch operand']
  #allocation4 [shape = 'f32[2,8,8]{2,1,0:T(8,128)}', space=vmem, size = 0x2000, scoped, tag = 'scratch operand']
  %s0 = inlined_call_operand.vmem [shape: bf16[2,4,8,8], index: 0, kind: input, shape index: {}]
  %s1 = inlined_call_operand.vmem [shape: bf16[2,2,16,8], index: 1, kind: input, shape index: {}]
  %s2 = inlined_call_operand.vmem [shape: bf16[2,2,16,8], index: 2, kind: input, shape index: {}]
  %s3 = inlined_call_operand.vmem [shape: f32[1,1,8,16], index: 3, kind: input, shape index: {}]
  %s4 = inlined_call_operand.vmem [shape: bf16[2,4,8,8], index: 4, kind: output, shape index: {}]
  %s5 = sld [smem:[#allocation0]]
  $region57: #{run.16} parent=0
    _
  %s7 = ssub.s32 1, %s5
  %s8 = scalar_select 0, %s7, %s5
  loop: start=0, step=1, limit=6
  $region2: #{run.16} parent=0 // loop_pre_header
    _
  $region3: #{run.16} parent=0 // loop_header
    %s10 = sphi 0, %s14
    %p11 = scmp.ge.s32.totalorder %s10, 6
    %s17 = sphi 0, %s36
    %s18 = sphi 0, %s32
    %s19 = sphi 0, %s28
    %s20 = sphi 0, %s17
    %s21 = sphi 0, %s18
    %s22 = sphi 0, %s19
    %s23 = sphi 0, %s20
    %s24 = sphi 0, %s21
    %s25 = sphi 0, %s22
    %s41 = sphi 0, %s43
    %s44 = sphi 0, %s41
    %s45 = sphi 0, %s44
    %s61 = sphi 0, %s45
    %s71 = sphi 0, %s73
    %s74 = sphi 0, %s71
    %s75 = sphi 0, %s74
    %s91 = sphi 0, %s75
    %s101 = sphi 0, %s103
    %s104 = sphi 0, %s101
    %s105 = sphi 0, %s104
    %s121 = sphi 0, %s105
    %s127 = sphi 0, %s129
    %s130 = sphi 0, %s127
    %s131 = sphi 0, %s130
    %s147 = sphi 0, %s131
    %s155 = sphi 0, %s157
    %s158 = sphi 0, %s155
    %s159 = sphi 0, %s158
    %s175 = sphi 0, %s159
  $region4: #{run.16} parent=0 // loop_header_branch
    %13 = sbr.rel (%p11) target = $region8
  $region5: #{run.16} parent=0 // loop_body
    %s15 = ssub.s32 %s10, 1
    %s16 = ssub.s32 %s10, 2
    %s26 = sadd.s32 1, %s19
    %p27 = scmp.ge.s32.totalorder %s26, 1
    %s28 = scalar_select %p27, 0, %s26
    %s29 = sadd.s32 1, %s18
    %s30 = scalar_select %p27, %s29, %s18
    %p31 = scmp.ge.s32.totalorder %s30, 2
    %s32 = scalar_select %p31, 0, %s30
    %s33 = sadd.s32 1, %s17
    %s34 = scalar_select %p31, %s33, %s17
    %p35 = scmp.ge.s32.totalorder %s34, 2
    %s36 = scalar_select %p35, 0, %s34
    %s37 = ssub.s32 %s17, %s36
    %s38 = ssub.s32 %s18, %s32
    %s39 = sor.u32 %s37, %s38
    %p40 = scmp.eq.s32.totalorder %s39, 0
    %s42 = sadd.s32 %s41, 1
    %s43 = scalar_select %p40, %s41, %s42
    %p46 = pneg %p40
    %p47 = scmp.eq.s32.totalorder %s10, 3
    %p48 = por %p46, %p47
    %p49 = scmp.ne.s32.totalorder %s41, %s44
    %p50 = scmp.eq.s32.totalorder %s10, 0
    %p51 = por %p49, %p50
    %p52 = scmp.ne.s32.totalorder %s41, %s44
    %p53 = scmp.eq.s32.totalorder %s15, 3
    %p54 = por %p52, %p53
    %p55 = scmp.ne.s32.totalorder %s44, %s45
    %p56 = scmp.eq.s32.totalorder %s15, 0
    %p57 = por %p55, %p56
    %p58 = scmp.ne.s32.totalorder %s44, %s45
    %p59 = scmp.eq.s32.totalorder %s16, 3
    %p60 = por %p58, %p59
    %p62 = scmp.ne.s32.totalorder %s45, %s61
    %p63 = scmp.eq.s32.totalorder %s16, 0
    %p64 = por %p62, %p63
    %s65 = ssub.s32 %s17, %s36
    %s66 = ssub.s32 %s18, %s32
    %s67 = sor.u32 %s65, %s66
    %s68 = ssub.s32 %s19, %s28
    %s69 = sor.u32 %s67, %s68
    %p70 = scmp.eq.s32.totalorder %s69, 0
    %s72 = sadd.s32 %s71, 1
    %s73 = scalar_select %p70, %s71, %s72
    %p76 = pneg %p70
    %p77 = scmp.eq.s32.totalorder %s10, 3
    %p78 = por %p76, %p77
    %p79 = scmp.ne.s32.totalorder %s71, %s74
    %p80 = scmp.eq.s32.totalorder %s10, 0
    %p81 = por %p79, %p80
    %p82 = scmp.ne.s32.totalorder %s71, %s74
    %p83 = scmp.eq.s32.totalorder %s15, 3
    %p84 = por %p82, %p83
    %p85 = scmp.ne.s32.totalorder %s74, %s75
    %p86 = scmp.eq.s32.totalorder %s15, 0
    %p87 = por %p85, %p86
    %p88 = scmp.ne.s32.totalorder %s74, %s75
    %p89 = scmp.eq.s32.totalorder %s16, 3
    %p90 = por %p88, %p89
    %p92 = scmp.ne.s32.totalorder %s75, %s91
    %p93 = scmp.eq.s32.totalorder %s16, 0
    %p94 = por %p92, %p93
    %s95 = ssub.s32 %s17, %s36
    %s96 = ssub.s32 %s18, %s32
    %s97 = sor.u32 %s95, %s96
    %s98 = ssub.s32 %s19, %s28
    %s99 = sor.u32 %s97, %s98
    %p100 = scmp.eq.s32.totalorder %s99, 0
    %s102 = sadd.s32 %s101, 1
    %s103 = scalar_select %p100, %s101, %s102
    %p106 = pneg %p100
    %p107 = scmp.eq.s32.totalorder %s10, 3
    %p108 = por %p106, %p107
    %p109 = scmp.ne.s32.totalorder %s101, %s104
    %p110 = scmp.eq.s32.totalorder %s10, 0
    %p111 = por %p109, %p110
    %p112 = scmp.ne.s32.totalorder %s101, %s104
    %p113 = scmp.eq.s32.totalorder %s15, 3
    %p114 = por %p112, %p113
    %p115 = scmp.ne.s32.totalorder %s104, %s105
    %p116 = scmp.eq.s32.totalorder %s15, 0
    %p117 = por %p115, %p116
    %p118 = scmp.ne.s32.totalorder %s104, %s105
    %p119 = scmp.eq.s32.totalorder %s16, 3
    %p120 = por %p118, %p119
    %p122 = scmp.ne.s32.totalorder %s105, %s121
    %p123 = scmp.eq.s32.totalorder %s16, 0
    %p124 = por %p122, %p123
    %s125 = ssub.s32 %s19, %s28
    %p126 = scmp.eq.s32.totalorder %s125, 0
    %s128 = sadd.s32 %s127, 1
    %s129 = scalar_select %p126, %s127, %s128
    %p132 = pneg %p126
    %p133 = scmp.eq.s32.totalorder %s10, 3
    %p134 = por %p132, %p133
    %p135 = scmp.ne.s32.totalorder %s127, %s130
    %p136 = scmp.eq.s32.totalorder %s10, 0
    %p137 = por %p135, %p136
    %p138 = scmp.ne.s32.totalorder %s127, %s130
    %p139 = scmp.eq.s32.totalorder %s15, 3
    %p140 = por %p138, %p139
    %p141 = scmp.ne.s32.totalorder %s130, %s131
    %p142 = scmp.eq.s32.totalorder %s15, 0
    %p143 = por %p141, %p142
    %p144 = scmp.ne.s32.totalorder %s130, %s131
    %p145 = scmp.eq.s32.totalorder %s16, 3
    %p146 = por %p144, %p145
    %p148 = scmp.ne.s32.totalorder %s131, %s147
    %p149 = scmp.eq.s32.totalorder %s16, 0
    %p150 = por %p148, %p149
    %s151 = ssub.s32 %s17, %s36
    %s152 = ssub.s32 %s18, %s32
    %s153 = sor.u32 %s151, %s152
    %p154 = scmp.eq.s32.totalorder %s153, 0
    %s156 = sadd.s32 %s155, 1
    %s157 = scalar_select %p154, %s155, %s156
    %p160 = pneg %p154
    %p161 = scmp.eq.s32.totalorder %s10, 3
    %p162 = por %p160, %p161
    %p163 = scmp.ne.s32.totalorder %s155, %s158
    %p164 = scmp.eq.s32.totalorder %s10, 0
    %p165 = por %p163, %p164
    %p166 = scmp.ne.s32.totalorder %s155, %s158
    %p167 = scmp.eq.s32.totalorder %s15, 3
    %p168 = por %p166, %p167
    %p169 = scmp.ne.s32.totalorder %s158, %s159
    %p170 = scmp.eq.s32.totalorder %s15, 0
    %p171 = por %p169, %p170
    %p172 = scmp.ne.s32.totalorder %s158, %s159
    %p173 = scmp.eq.s32.totalorder %s16, 3
    %p174 = por %p172, %p173
    %p176 = scmp.ne.s32.totalorder %s159, %s175
    %p177 = scmp.eq.s32.totalorder %s16, 0
    %p178 = por %p176, %p177
    %p179 = scmp.le.s32.totalorder 1, %s10
    %p180 = scmp.lt.s32.totalorder %s10, 5
    %p181 = pnand %p179, %p180
    %p182 = pneg %p181
    // Predicated region
    $region9: #{run.16} parent=5 // pred_check
      _
    $region10: #{run.16} parent=5 // pred_check_branch
      %184 = sbr.rel (%p181) target = $region12
    $region11: #{run.16} parent=5 // pred_region
      %s185 = ssub.s32 %s10, 1
      // Predicated region
      $region13: #{run.16} parent=11 // pred_check
        %p186 = pneg %p143
      $region14: #{run.16} parent=11 // pred_check_branch
        %188 = sbr.rel (%p186) target = $region16
      $region15: #{run.16} parent=11 // pred_region
        %p189 = scmp.lt.s32.totalorder %s22, 0
        %s190 = scalar_select %p189, %s22, 0
        %s191 = smul.addr %s190, 8
        %s192 = scalar_lea.vmem %s3, %s191
      $region16: #{run.16} parent=11 // pred_fallthru
        _
    $region12: #{run.16} parent=5 // pred_fallthru
      _
    %p193 = scmp.lt.s32.totalorder %s10, 4
    // Predicated region
    $region17: #{run.16} parent=5 // pred_check
      %p194 = pneg %p193
    $region18: #{run.16} parent=5 // pred_check_branch
      %196 = sbr.rel (%p194) target = $region20
    $region19: #{run.16} parent=5 // pred_region
      // Predicated region
      $region21: #{run.16} parent=19 // pred_check
        %p197 = pneg %p51
      $region22: #{run.16} parent=19 // pred_check_branch
        %199 = sbr.rel (%p197) target = $region24
      $region23: #{run.16} parent=19 // pred_region
        %s200 = smul.u32 2, %s18
        %p201 = scmp.lt.s32.totalorder %s17, 1
        %s202 = scalar_select %p201, %s17, 1
        %p203 = scmp.lt.s32.totalorder %s200, 3
        %s204 = scalar_select %p203, %s200, 3
        %s205 = smul.addr %s202, 4
        %s206 = sadd.s32 %s204, %s205
        %s207 = smul.addr %s206, 4
        %s208 = scalar_lea.vmem %s0, %s207
        %s209 = smul.u32 2, %s18
      $region24: #{run.16} parent=19 // pred_fallthru
        _
      // Predicated region
      $region25: #{run.16} parent=19 // pred_check
        %p210 = pneg %p81
      $region26: #{run.16} parent=19 // pred_check_branch
        %212 = sbr.rel (%p210) target = $region28
      $region27: #{run.16} parent=19 // pred_region
        %s213 = smul.u32 2, %s19
        %p214 = scmp.lt.s32.totalorder %s17, 1
        %s215 = scalar_select %p214, %s17, 1
        %p216 = scmp.lt.s32.totalorder %s18, 1
        %s217 = scalar_select %p216, %s18, 1
        %p218 = scmp.lt.s32.totalorder %s213, 1
        %s219 = scalar_select %p218, %s213, 1
        %s220 = smul.addr %s217, 2
        %s221 = sadd.s32 %s219, %s220
        %s222 = smul.addr %s215, 4
        %s223 = sadd.s32 %s221, %s222
        %s224 = smul.addr %s223, 4
        %s225 = scalar_lea.vmem %s1, %s224
        %s226 = smul.u32 2, %s19
      $region28: #{run.16} parent=19 // pred_fallthru
        _
      // Predicated region
      $region29: #{run.16} parent=19 // pred_check
        %p227 = pneg %p111
      $region30: #{run.16} parent=19 // pred_check_branch
        %229 = sbr.rel (%p227) target = $region32
      $region31: #{run.16} parent=19 // pred_region
        %s230 = smul.u32 2, %s19
        %p231 = scmp.lt.s32.totalorder %s17, 1
        %s232 = scalar_select %p231, %s17, 1
        %p233 = scmp.lt.s32.totalorder %s18, 1
        %s234 = scalar_select %p233, %s18, 1
        %p235 = scmp.lt.s32.totalorder %s230, 1
        %s236 = scalar_select %p235, %s230, 1
        %s237 = smul.addr %s234, 2
        %s238 = sadd.s32 %s236, %s237
        %s239 = smul.addr %s232, 4
        %s240 = sadd.s32 %s238, %s239
        %s241 = smul.addr %s240, 4
        %s242 = scalar_lea.vmem %s2, %s241
        %s243 = smul.u32 2, %s19
      $region32: #{run.16} parent=19 // pred_fallthru
        _
    $region20: #{run.16} parent=5 // pred_fallthru
      _
    %p244 = scmp.le.s32.totalorder 1, %s10
    %p245 = scmp.lt.s32.totalorder %s10, 5
    %p246 = pnand %p244, %p245
    %p247 = pneg %p246
    // Predicated region
    $region33: #{run.16} parent=5 // pred_check
      _
    $region34: #{run.16} parent=5 // pred_check_branch
      %249 = sbr.rel (%p246) target = $region36
    $region35: #{run.16} parent=5 // pred_region
      %s250 = ssub.s32 %s10, 1
      %s251 = smul.u32 2, %s21
      %p252 = scmp.lt.s32.totalorder %s20, 1
      %s253 = scalar_select %p252, %s20, 1
      %p254 = scmp.lt.s32.totalorder %s251, 3
      %s255 = scalar_select %p254, %s251, 3
      %s256 = smul.addr %s253, 4
      %s257 = sadd.s32 %s255, %s256
      %s258 = smul.addr %s257, 4
      %s259 = scalar_lea.vmem %s0, %s258
      %p260 = pneg %p57
      %p261 = pneg %p54
      %s262 = smul.u32 2, %s22
      %p263 = scmp.lt.s32.totalorder %s20, 1
      %s264 = scalar_select %p263, %s20, 1
      %p265 = scmp.lt.s32.totalorder %s21, 1
      %s266 = scalar_select %p265, %s21, 1
      %p267 = scmp.lt.s32.totalorder %s262, 1
      %s268 = scalar_select %p267, %s262, 1
      %s269 = smul.addr %s266, 2
      %s270 = sadd.s32 %s268, %s269
      %s271 = smul.addr %s264, 4
      %s272 = sadd.s32 %s270, %s271
      %s273 = smul.addr %s272, 4
      %s274 = scalar_lea.vmem %s1, %s273
      %p275 = pneg %p87
      %p276 = pneg %p84
      %s277 = smul.u32 2, %s22
      %p278 = scmp.lt.s32.totalorder %s20, 1
      %s279 = scalar_select %p278, %s20, 1
      %p280 = scmp.lt.s32.totalorder %s21, 1
      %s281 = scalar_select %p280, %s21, 1
      %p282 = scmp.lt.s32.totalorder %s277, 1
      %s283 = scalar_select %p282, %s277, 1
      %s284 = smul.addr %s281, 2
      %s285 = sadd.s32 %s283, %s284
      %s286 = smul.addr %s279, 4
      %s287 = sadd.s32 %s285, %s286
      %s288 = smul.addr %s287, 4
      %s289 = scalar_lea.vmem %s2, %s288
      %p290 = pneg %p117
      %p291 = pneg %p114
      %p292 = scmp.lt.s32.totalorder %s22, 0
      %s293 = scalar_select %p292, %s22, 0
      %s294 = smul.addr %s293, 8
      %s295 = scalar_lea.vmem %s3, %s294
      %p296 = pneg %p143
      %p297 = pneg %p140
      %p298 = pneg %p171
      %p299 = pneg %p168
      %s300 = smul.u32 2, %s21
      %p301 = scmp.lt.s32.totalorder %s20, 1
      %s302 = scalar_select %p301, %s20, 1
      %p303 = scmp.lt.s32.totalorder %s300, 3
      %s304 = scalar_select %p303, %s300, 3
      %s305 = smul.addr %s302, 4
      %s306 = sadd.s32 %s304, %s305
      %s307 = smul.addr %s306, 4
      %s308 = scalar_lea.vmem %s4, %s307
      %s309 = smul.u32 2, %s21
      %p310 = scmp.lt.s32.totalorder %s20, 1
      %s311 = scalar_select %p310, %s20, 1
      %p312 = scmp.lt.s32.totalorder %s309, 3
      %s313 = scalar_select %p312, %s309, 3
      %s314 = smul.addr %s311, 4
      %s315 = sadd.s32 %s313, %s314
      %s316 = smul.addr %s315, 4
      %s317 = scalar_lea.vmem %s0, %s316
      %s318 = smul.u32 2, %s21
      %s319 = smul.u32 2, %s22
      %p320 = scmp.lt.s32.totalorder %s20, 1
      %s321 = scalar_select %p320, %s20, 1
      %p322 = scmp.lt.s32.totalorder %s21, 1
      %s323 = scalar_select %p322, %s21, 1
      %p324 = scmp.lt.s32.totalorder %s319, 1
      %s325 = scalar_select %p324, %s319, 1
      %s326 = smul.addr %s323, 2
      %s327 = sadd.s32 %s325, %s326
      %s328 = smul.addr %s321, 4
      %s329 = sadd.s32 %s327, %s328
      %s330 = smul.addr %s329, 4
      %s331 = scalar_lea.vmem %s1, %s330
      %s332 = smul.u32 2, %s22
      %s333 = smul.u32 2, %s22
      %p334 = scmp.lt.s32.totalorder %s20, 1
      %s335 = scalar_select %p334, %s20, 1
      %p336 = scmp.lt.s32.totalorder %s21, 1
      %s337 = scalar_select %p336, %s21, 1
      %p338 = scmp.lt.s32.totalorder %s333, 1
      %s339 = scalar_select %p338, %s333, 1
      %s340 = smul.addr %s337, 2
      %s341 = sadd.s32 %s339, %s340
      %s342 = smul.addr %s335, 4
      %s343 = sadd.s32 %s341, %s342
      %s344 = smul.addr %s343, 4
      %s345 = scalar_lea.vmem %s2, %s344
      %s346 = smul.u32 2, %s22
      %p347 = scmp.lt.s32.totalorder %s22, 0
      %s348 = scalar_select %p347, %s22, 0
      %s349 = smul.addr %s348, 8
      %s350 = scalar_lea.vmem %s3, %s349
      %s351 = smul.u32 2, %s21
      %p352 = scmp.lt.s32.totalorder %s20, 1
      %s353 = scalar_select %p352, %s20, 1
      %p354 = scmp.lt.s32.totalorder %s351, 3
      %s355 = scalar_select %p354, %s351, 3
      %s356 = smul.addr %s353, 4
      %s357 = sadd.s32 %s355, %s356
      %s358 = smul.addr %s357, 4
      %s359 = scalar_lea.vmem %s4, %s358
      %s360 = smul.u32 2, %s21
      %p362 = scmp.eq.s32.totalorder %s22, 0
      // Predicated region
      $region37: #{run.16} parent=35 // pred_check
        %p363 = pneg %p362
      $region38: #{run.16} parent=35 // pred_check_branch
        %365 = sbr.rel (%p363) target = $region40
      $region39: #{run.16} parent=35 // pred_region
        %vm366 = vcmask 7168
        %367 = vst.msk [vmem:[#allocation2] sm:$0xff] %vm366, -inf
        %368 = vst.msk [vmem:[#allocation2 + $0x8] sm:$0xff] %vm366, -inf
        %369 = vst.msk [vmem:[#allocation3] sm:$0xff] %vm366, 0.0
        %370 = vst.msk [vmem:[#allocation3 + $0x8] sm:$0xff] %vm366, 0.0
        %vm371 = vcmask 64512
        %372 = vst.msk [vmem:[#allocation4] sm:$0xff] %vm371, 0.0
        %373 = vst.msk [vmem:[#allocation4 + $0x8] sm:$0xff] %vm371, 0.0
      $region40: #{run.16} parent=35 // pred_fallthru
        _
      %v374 = vld [vmem:[%s317] sm:$0xf]
      %v375 = vld [vmem:[%s317 + $0x4] sm:$0xf]
      %v376 = vld [vmem:[%s331] sm:$0xf]
      %v377 = vld [vmem:[%s331 + $0x4] sm:$0xf]
      %v378 = vld [vmem:[%s345] sm:$0xf]
      %v379 = vld [vmem:[%s345 + $0x4] sm:$0xf]
      %v380 = vld [vmem:[%s350] sm:$0xff]
      %v383 = vunpack.c.l.b16 %v374
      %v384 = vunpack.c.l.b16 %v375
      %v385 = vpack.c.b16 %v384, %v383
      %v388 = vunpack.c.l.b16 %v376
      %v389 = vunpack.c.l.b16 %v377
      %v390 = vpack.c.b16 %v389, %v388
      %vm391 = vcmask 64512
      %v393 = vsel %vm391, %v385, 0
      %v396 = vsel %vm391, %v390, 0
      %398 = vmatpush.bf16.xpose.msra.mxu0 0
      %399 = vmatpush.bf16.xpose.msra.mxu0 0
      %400 = vmatpush.bf16.xpose.msra.mxu0 0
      %401 = vmatpush.bf16.xpose.msra.mxu0 0
      %402 = vmatpush.bf16.xpose.msra.mxu0 0
      %403 = vmatpush.bf16.xpose.msra.mxu0 0
      %404 = vmatpush.bf16.xpose.msra.mxu0 0
      %405 = vmatpush.bf16.xpose.msra.mxu0 %v396
      %406 = vmatmul.bf16.gmra.mxu0 %v393
      %v407 = vpop.f32.mrf.mxu0
      %v408 = vadd.f32 0.0, %v407
      %v409 = vpop.f32.mrf.mxu0
      %v410 = vadd.f32 0.0, %v409
      %411 = vdwg.mxu0
      %v412 = vmul.f32 %v408, 0.35355338
      %v413 = vmul.f32 %v410, 0.35355338
      %v414 = vadd.f32 %v412, %v380
      %v415 = vadd.f32 %v413, %v380
      %v416 = vld [vmem:[#allocation2] sm:$0xff]
      %v417 = vld [vmem:[#allocation2 + $0x8] sm:$0xff]
      %vm418 = vcmask 130048
      %v419 = vsel %vm418, %v414, -inf
      %420 = vmax.xlane.f32.xlu0 %v419
      %v421 = vpop.xlane.xlu0 %420
      %v422 = vsel %vm418, %v415, -inf
      %423 = vmax.xlane.f32.xlu0 %v422
      %v424 = vpop.xlane.xlu0 %423
      %v425 = vmax.f32 %v416, %v421
      %v426 = vmax.f32 %v417, %v424
      %v427 = vsub.f32 %v416, %v425
      %v428 = vsub.f32 %v417, %v426
      %v429 = vmul.f32 %v427, 1.442695
      %v430 = vpow.pop %v429
      %v431 = vmul.f32 %v428, 1.442695
      %v432 = vpow.pop %v431
      %434 = vset.pattern.permute.xlu0 0
      %435 = vperm.xlu0 %434, %v425
      %v436 = vpop.permute.xlu0 %435
      %439 = vset.pattern.permute.xlu0 0
      %440 = vperm.xlu0 %439, %v426
      %v441 = vpop.permute.xlu0 %440
      %v443 = vsub.f32 %v414, %v436
      %v444 = vsub.f32 %v415, %v441
      %v445 = vmul.f32 %v443, 1.442695
      %v446 = vpow.pop %v445
      %v447 = vmul.f32 %v444, 1.442695
      %v448 = vpow.pop %v447
      %v449 = vld [vmem:[#allocation3] sm:$0xff]
      %v450 = vld [vmem:[#allocation3 + $0x8] sm:$0xff]
      %v451 = vmul.f32 %v430, %v449
      %v452 = vmul.f32 %v432, %v450
      %v453 = vsel %vm418, %v446, 0.0
      %454 = vadd.xlane.f32.xlu0 %v453
      %v455 = vpop.xlane.xlu0 %454
      %v456 = vsel %vm418, %v448, 0.0
      %457 = vadd.xlane.f32.xlu0 %v456
      %v458 = vpop.xlane.xlu0 %457
      %v459 = vadd.f32 %v451, %v455
      %v460 = vadd.f32 %v452, %v458
      %vm461 = vcmask 7168
      %462 = vst.msk [vmem:[#allocation3] sm:$0xff] %vm461, %v459
      %463 = vst.msk [vmem:[#allocation3 + $0x8] sm:$0xff] %vm461, %v460
      %v464 = vld [vmem:[#allocation4] sm:$0xff]
      %v465 = vld [vmem:[#allocation4 + $0x8] sm:$0xff]
      %467 = vset.pattern.permute.xlu0 0
      %468 = vperm.xlu0 %467, %v430
      %v469 = vpop.permute.xlu0 %468
      %472 = vset.pattern.permute.xlu0 0
      %473 = vperm.xlu0 %472, %v432
      %v474 = vpop.permute.xlu0 %473
      %v476 = vmul.f32 %v469, %v464
      %v477 = vmul.f32 %v474, %v465
      %v478 = vpack.c.bf16 %v446, %v446
      %v479 = vpack.c.bf16 %v448, %v448
      %v482 = vunpack.c.l.b16 %v478
      %v483 = vunpack.c.l.b16 %v479
      %v484 = vpack.c.b16 %v483, %v482
      %v487 = vunpack.c.l.b16 %v378
      %v488 = vunpack.c.l.b16 %v379
      %v489 = vpack.c.b16 %v488, %v487
      %v492 = vsel %vm418, %v484, 0
      %494 = vmatpush.bf16.msra.mxu0 0
      %495 = vmatpush.bf16.msra.mxu0 0
      %496 = vmatpush.bf16.msra.mxu0 0
      %497 = vmatpush.bf16.msra.mxu0 0
      %498 = vmatpush.bf16.msra.mxu0 0
      %499 = vmatpush.bf16.msra.mxu0 0
      %500 = vmatpush.bf16.msra.mxu0 0
      %501 = vmatpush.bf16.msra.mxu0 %v489
      %502 = vmatmul.bf16.gmra.mxu0 %v492
      %v503 = vpop.f32.mrf.mxu0
      %v504 = vadd.f32 0.0, %v503
      %v505 = vpop.f32.mrf.mxu0
      %v506 = vadd.f32 0.0, %v505
      %507 = vdwg.mxu0
      %v508 = vadd.f32 %v476, %v504
      %v509 = vadd.f32 %v477, %v506
      %510 = vst.msk [vmem:[#allocation4] sm:$0xff] %vm391, %v508
      %511 = vst.msk [vmem:[#allocation4 + $0x8] sm:$0xff] %vm391, %v509
      %512 = vst.msk [vmem:[#allocation2] sm:$0xff] %vm461, %v425
      %513 = vst.msk [vmem:[#allocation2 + $0x8] sm:$0xff] %vm461, %v426
      // Predicated region
      $region41: #{run.16} parent=35 // pred_check
        %p514 = pneg %p362
      $region42: #{run.16} parent=35 // pred_check_branch
        %516 = sbr.rel (%p514) target = $region44
      $region43: #{run.16} parent=35 // pred_region
        %v517 = vld [vmem:[#allocation4] sm:$0xff]
        %v518 = vld [vmem:[#allocation4 + $0x8] sm:$0xff]
        %v519 = vld [vmem:[#allocation3] sm:$0xff]
        %v520 = vld [vmem:[#allocation3 + $0x8] sm:$0xff]
        %v521 = vrcp.pop %v519
        %v522 = vrcp.pop %v520
        %524 = vset.pattern.permute.xlu0 0
        %525 = vperm.xlu0 %524, %v521
        %v526 = vpop.permute.xlu0 %525
        %529 = vset.pattern.permute.xlu0 0
        %530 = vperm.xlu0 %529, %v522
        %v531 = vpop.permute.xlu0 %530
        %v533 = vmul.f32 %v517, %v526
        %v534 = vmul.f32 %v518, %v531
        %v535 = vpack.c.bf16 %v533, %v533
        %v536 = vpack.c.bf16 %v534, %v534
        %vm537 = vcmask 60416
        %538 = vst.msk [vmem:[%s359] sm:$0xf] %vm537, %v535
        %539 = vst.msk [vmem:[%s359 + $0x4] sm:$0xf] %vm537, %v536
      $region44: #{run.16} parent=35 // pred_fallthru
        _
      %s540 = smul.u32 2, %s21
      %p541 = scmp.lt.s32.totalorder %s20, 1
      %s542 = scalar_select %p541, %s20, 1
      %p543 = scmp.lt.s32.totalorder %s540, 3
      %s544 = scalar_select %p543, %s540, 3
      %s545 = smul.addr %s542, 4
      %s546 = sadd.s32 %s544, %s545
      %s547 = smul.addr %s546, 4
      %s548 = scalar_lea.vmem %s4, %s547
      // Predicated region
      $region45: #{run.16} parent=35 // pred_check
        %p549 = pneg %p168
      $region46: #{run.16} parent=35 // pred_check_branch
        %551 = sbr.rel (%p549) target = $region48
      $region47: #{run.16} parent=35 // pred_region
        %s552 = smul.u32 2, %s21
      $region48: #{run.16} parent=35 // pred_fallthru
        _
    $region36: #{run.16} parent=5 // pred_fallthru
      _
    %p553 = scmp.le.s32.totalorder 2, %s10
    // Predicated region
    $region49: #{run.16} parent=5 // pred_check
      %p554 = pneg %p553
    $region50: #{run.16} parent=5 // pred_check_branch
      %556 = sbr.rel (%p554) target = $region52
    $region51: #{run.16} parent=5 // pred_region
      %s557 = ssub.s32 %s10, 2
      // Predicated region
      $region53: #{run.16} parent=51 // pred_check
        %p558 = pneg %p174
      $region54: #{run.16} parent=51 // pred_check_branch
        %560 = sbr.rel (%p558) target = $region56
      $region55: #{run.16} parent=51 // pred_region
        %s561 = smul.u32 2, %s24
        %p562 = scmp.lt.s32.totalorder %s23, 1
        %s563 = scalar_select %p562, %s23, 1
        %p564 = scmp.lt.s32.totalorder %s561, 3
        %s565 = scalar_select %p564, %s561, 3
        %s566 = smul.addr %s563, 4
        %s567 = sadd.s32 %s565, %s566
        %s568 = smul.addr %s567, 4
        %s569 = scalar_lea.vmem %s4, %s568
      $region56: #{run.16} parent=51 // pred_fallthru
        _
    $region52: #{run.16} parent=5 // pred_fallthru
      _
  $region6: #{run.16} parent=0 // loop_footer
    %s14 = sadd.s32 1, %s10
  $region7: #{run.16} parent=0 // loop_footer_branch
    %9 = sbr.rel target = $region3
  $region8: #{run.16} parent=0 // loop_exit
    _

// kernel: run.19
$region0: #{run.19}
  #allocation0 [shape = 'u32[]', space=smem, size = 0x4, offset = 0x4, fixed_abs, tag = 'smem constant byte address 0x4 - core index']
  #allocation1 [shape = 'u32[72,128]{1,0:T(1,128)}', space=vmem, size = 0x9000, scoped, tag = 'internal scratch']
  #allocation2 [shape = 'f32[16,32]{1,0:T(8,128)}', space=vmem, size = 0x2000, scoped, tag = 'scratch operand']
  %s0 = inlined_call_operand.vmem [shape: bf16[16,32], index: 0, kind: input, shape index: {}]
  %s1 = inlined_call_operand.vmem [shape: bf16[32,128], index: 1, kind: input, shape index: {}]
  %s2 = inlined_call_operand.vmem [shape: bf16[32,128], index: 2, kind: input, shape index: {}]
  %s3 = inlined_call_operand.vmem [shape: bf16[128,32], index: 3, kind: input, shape index: {}]
  %s4 = inlined_call_operand.vmem [shape: bf16[16,32], index: 4, kind: output, shape index: {}]
  %s5 = sld [smem:[#allocation0]]
  $region34: #{run.19} parent=0
    _
  %s7 = ssub.s32 1, %s5
  %s8 = scalar_select 0, %s7, %s5
  // Predicated region
  $region2: #{run.19} parent=0 // pred_check
    _
  $region3: #{run.19} parent=0 // pred_check_branch
    %10 = sbr.rel (0) target = $region5
  $region4: #{run.19} parent=0 // pred_region
    _
  $region5: #{run.19} parent=0 // pred_fallthru
    _
  // Predicated region
  $region6: #{run.19} parent=0 // pred_check
    _
  $region7: #{run.19} parent=0 // pred_check_branch
    %12 = sbr.rel (0) target = $region9
  $region8: #{run.19} parent=0 // pred_region
    _
  $region9: #{run.19} parent=0 // pred_fallthru
    _
  // Predicated region
  $region10: #{run.19} parent=0 // pred_check
    _
  $region11: #{run.19} parent=0 // pred_check_branch
    %14 = sbr.rel (0) target = $region13
  $region12: #{run.19} parent=0 // pred_region
    _
  $region13: #{run.19} parent=0 // pred_fallthru
    _
  // Predicated region
  $region14: #{run.19} parent=0 // pred_check
    _
  $region15: #{run.19} parent=0 // pred_check_branch
    %16 = sbr.rel (0) target = $region17
  $region16: #{run.19} parent=0 // pred_region
    _
  $region17: #{run.19} parent=0 // pred_fallthru
    _
  %p18 = scmp.eq.s32.totalorder 0, 0
  // Predicated region
  $region18: #{run.19} parent=0 // pred_check
    %p19 = pneg %p18
  $region19: #{run.19} parent=0 // pred_check_branch
    %21 = sbr.rel (%p19) target = $region21
  $region20: #{run.19} parent=0 // pred_region
    %vm22 = vcmask 261120
    %23 = vst.msk [vmem:[#allocation2] sm:$0xff] %vm22, 0.0
    %24 = vst.msk [vmem:[#allocation2 + $0x8] sm:$0xff] %vm22, 0.0
  $region21: #{run.19} parent=0 // pred_fallthru
    _
  %v25 = vld [vmem:[%s0] sm:$0xf]
  %v26 = vld [vmem:[%s0 + $0x4] sm:$0xf]
  %v27 = vld [vmem:[%s1] sm:$0xf]
  %v28 = vld [vmem:[%s1 + $0x4] sm:$0xf]
  %v29 = vld [vmem:[%s1 + $0x8] sm:$0xf]
  %v30 = vld [vmem:[%s1 + $0xc] sm:$0xf]
  %v33 = vunpack.c.l.b16 %v25
  %v34 = vunpack.c.l.b16 %v26
  %v35 = vpack.c.b16 %v34, %v33
  %v40 = vunpack.c.l.b16 %v27
  %v41 = vunpack.c.l.b16 %v28
  %v42 = vunpack.c.l.b16 %v29
  %v43 = vunpack.c.l.b16 %v30
  %v44 = vpack.c.b16 %v41, %v40
  %v45 = vpack.c.b16 %v43, %v42
  %vm48 = vcmask 261120
  %v50 = vsel %vm48, %v35, 0
  %52 = vmatpush.bf16.msra.mxu0 0
  %53 = vmatpush.bf16.msra.mxu0 0
  %54 = vmatpush.bf16.msra.mxu0 0
  %55 = vmatpush.bf16.msra.mxu0 0
  %56 = vmatpush.bf16.msra.mxu0 0
  %57 = vmatpush.bf16.msra.mxu0 0
  %58 = vmatpush.bf16.msra.mxu0 %v45
  %59 = vmatpush.bf16.msra.mxu0 %v44
  %60 = vmatmul.bf16.gmra.mxu0 %v50
  %v61 = vpop.f32.mrf.mxu0
  %v62 = vadd.f32 0.0, %v61
  %v63 = vpop.f32.mrf.mxu0
  %v64 = vadd.f32 0.0, %v63
  %65 = vdwg.mxu0
  %v66 = vld [vmem:[%s2] sm:$0xf]
  %v67 = vld [vmem:[%s2 + $0x4] sm:$0xf]
  %v68 = vld [vmem:[%s2 + $0x8] sm:$0xf]
  %v69 = vld [vmem:[%s2 + $0xc] sm:$0xf]
  %v74 = vunpack.c.l.b16 %v66
  %v75 = vunpack.c.l.b16 %v67
  %v76 = vunpack.c.l.b16 %v68
  %v77 = vunpack.c.l.b16 %v69
  %v78 = vpack.c.b16 %v75, %v74
  %v79 = vpack.c.b16 %v77, %v76
  %82 = vmatpush.bf16.msra.mxu0 0
  %83 = vmatpush.bf16.msra.mxu0 0
  %84 = vmatpush.bf16.msra.mxu0 0
  %85 = vmatpush.bf16.msra.mxu0 0
  %86 = vmatpush.bf16.msra.mxu0 0
  %87 = vmatpush.bf16.msra.mxu0 0
  %88 = vmatpush.bf16.msra.mxu0 %v79
  %89 = vmatpush.bf16.msra.mxu0 %v78
  %90 = vmatmul.bf16.gmra.mxu0 %v50
  %v91 = vpop.f32.mrf.mxu0
  %v92 = vadd.f32 0.0, %v91
  %v93 = vpop.f32.mrf.mxu0
  %v94 = vadd.f32 0.0, %v93
  %95 = vdwg.mxu0
  %v96 = vmul.f32 %v62, %v62
  %v97 = vmul.f32 %v64, %v64
  %v98 = vmul.f32 %v62, %v96
  %v99 = vmul.f32 %v64, %v97
  %v100 = vmul.f32 %v98, 0.044715
  %v101 = vmul.f32 %v99, 0.044715
  %v102 = vadd.f32 %v62, %v100
  %v103 = vadd.f32 %v64, %v101
  %v104 = vmul.f32 %v102, 0.7978846
  %v105 = vmul.f32 %v103, 0.7978846
  %v106 = vtanh.pop %v104
  %v107 = vtanh.pop %v105
  %v108 = vadd.f32 %v106, 1.0
  %v109 = vadd.f32 %v107, 1.0
  %v110 = vmul.f32 %v108, 0.5
  %v111 = vmul.f32 %v109, 0.5
  %v112 = vmul.f32 %v62, %v110
  %v113 = vmul.f32 %v64, %v111
  %v114 = vmul.f32 %v112, %v92
  %v115 = vmul.f32 %v113, %v94
  %v116 = vld [vmem:[#allocation2] sm:$0xff]
  %v117 = vld [vmem:[#allocation2 + $0x8] sm:$0xff]
  %v118 = vpack.c.bf16 %v115, %v114
  %v119 = vld [vmem:[%s3] sm:$0xf]
  %v120 = vld [vmem:[%s3 + $0x4] sm:$0xf]
  %v121 = vld [vmem:[%s3 + $0x8] sm:$0xf]
  %v122 = vld [vmem:[%s3 + $0xc] sm:$0xf]
  %v123 = vld [vmem:[%s3 + $0x10] sm:$0xf]
  %v124 = vld [vmem:[%s3 + $0x14] sm:$0xf]
  %v125 = vld [vmem:[%s3 + $0x18] sm:$0xf]
  %v126 = vld [vmem:[%s3 + $0x1c] sm:$0xf]
  %v127 = vld [vmem:[%s3 + $0x20] sm:$0xf]
  %v128 = vld [vmem:[%s3 + $0x24] sm:$0xf]
  %v129 = vld [vmem:[%s3 + $0x28] sm:$0xf]
  %v130 = vld [vmem:[%s3 + $0x2c] sm:$0xf]
  %v131 = vld [vmem:[%s3 + $0x30] sm:$0xf]
  %v132 = vld [vmem:[%s3 + $0x34] sm:$0xf]
  %v133 = vld [vmem:[%s3 + $0x38] sm:$0xf]
  %v134 = vld [vmem:[%s3 + $0x3c] sm:$0xf]
  %v151 = vunpack.c.l.b16 %v119
  %v152 = vunpack.c.l.b16 %v120
  %v153 = vunpack.c.l.b16 %v121
  %v154 = vunpack.c.l.b16 %v122
  %v155 = vunpack.c.l.b16 %v123
  %v156 = vunpack.c.l.b16 %v124
  %v157 = vunpack.c.l.b16 %v125
  %v158 = vunpack.c.l.b16 %v126
  %v159 = vunpack.c.l.b16 %v127
  %v160 = vunpack.c.l.b16 %v128
  %v161 = vunpack.c.l.b16 %v129
  %v162 = vunpack.c.l.b16 %v130
  %v163 = vunpack.c.l.b16 %v131
  %v164 = vunpack.c.l.b16 %v132
  %v165 = vunpack.c.l.b16 %v133
  %v166 = vunpack.c.l.b16 %v134
  %v167 = vpack.c.b16 %v152, %v151
  %v168 = vpack.c.b16 %v154, %v153
  %v169 = vpack.c.b16 %v156, %v155
  %v170 = vpack.c.b16 %v158, %v157
  %v171 = vpack.c.b16 %v160, %v159
  %v172 = vpack.c.b16 %v162, %v161
  %v173 = vpack.c.b16 %v164, %v163
  %v174 = vpack.c.b16 %v166, %v165
  %183 = vmatpush.bf16.msra.mxu0 %v174
  %184 = vmatpush.bf16.msra.mxu0 %v173
  %185 = vmatpush.bf16.msra.mxu0 %v172
  %186 = vmatpush.bf16.msra.mxu0 %v171
  %187 = vmatpush.bf16.msra.mxu0 %v170
  %188 = vmatpush.bf16.msra.mxu0 %v169
  %189 = vmatpush.bf16.msra.mxu0 %v168
  %190 = vmatpush.bf16.msra.mxu0 %v167
  %191 = vmatmul.bf16.gmra.mxu0 %v118
  %v192 = vpop.f32.mrf.mxu0
  %v193 = vadd.f32 0.0, %v192
  %v194 = vpop.f32.mrf.mxu0
  %v195 = vadd.f32 0.0, %v194
  %196 = vdwg.mxu0
  %v197 = vadd.f32 %v116, %v193
  %v198 = vadd.f32 %v117, %v195
  %199 = vst.msk [vmem:[#allocation2] sm:$0xff] %vm48, %v197
  %200 = vst.msk [vmem:[#allocation2 + $0x8] sm:$0xff] %vm48, %v198
  // Predicated region
  $region22: #{run.19} parent=0 // pred_check
    %p201 = pneg %p18
  $region23: #{run.19} parent=0 // pred_check_branch
    %203 = sbr.rel (%p201) target = $region25
  $region24: #{run.19} parent=0 // pred_region
    %v204 = vld [vmem:[#allocation2] sm:$0xff]
    %v205 = vld [vmem:[#allocation2 + $0x8] sm:$0xff]
    %v206 = vpack.c.bf16 %v204, %v204
    %v207 = vpack.c.bf16 %v205, %v205
    %vm208 = vcmask 257024
    %209 = vst.msk [vmem:[%s4] sm:$0xf] %vm208, %v206
    %210 = vst.msk [vmem:[%s4 + $0x4] sm:$0xf] %vm208, %v207
  $region25: #{run.19} parent=0 // pred_fallthru
    _
  // Predicated region
  $region26: #{run.19} parent=0 // pred_check
    _
  $region27: #{run.19} parent=0 // pred_check_branch
    %212 = sbr.rel (0) target = $region29
  $region28: #{run.19} parent=0 // pred_region
    _
  $region29: #{run.19} parent=0 // pred_fallthru
    _
  // Predicated region
  $region30: #{run.19} parent=0 // pred_check
    _
  $region31: #{run.19} parent=0 // pred_check_branch
    %214 = sbr.rel (0) target = $region33
  $region32: #{run.19} parent=0 // pred_region
    _
  $region33: #{run.19} parent=0 // pred_fallthru
    _

// kernel: run.27
$region0: #{run.27}
  #allocation0 [shape = 'u32[]', space=smem, size = 0x4, offset = 0x4, fixed_abs, tag = 'smem constant byte address 0x4 - core index']
  #allocation1 [shape = 'u32[72,128]{1,0:T(1,128)}', space=vmem, size = 0x9000, scoped, tag = 'internal scratch']
  #allocation2 [shape = 'f32[2,1]{1,0:T(2,128)}', space=vmem, size = 0x400, scoped, tag = 'scratch operand']
  %s0 = inlined_call_operand.vmem [shape: bf16[2,32], index: 0, kind: input, shape index: {}]
  %s1 = inlined_call_operand.vmem [shape: bf16[32,128], index: 1, kind: input, shape index: {}]
  %s2 = inlined_call_operand.vmem [shape: s32[2,1], index: 2, kind: output, shape index: {}]
  %s3 = sld [smem:[#allocation0]]
  $region22: #{run.27} parent=0
    _
  %s5 = ssub.s32 1, %s3
  %s6 = scalar_select 0, %s5, %s3
  // Predicated region
  $region2: #{run.27} parent=0 // pred_check
    _
  $region3: #{run.27} parent=0 // pred_check_branch
    %8 = sbr.rel (0) target = $region5
  $region4: #{run.27} parent=0 // pred_region
    _
  $region5: #{run.27} parent=0 // pred_fallthru
    _
  // Predicated region
  $region6: #{run.27} parent=0 // pred_check
    _
  $region7: #{run.27} parent=0 // pred_check_branch
    %10 = sbr.rel (0) target = $region9
  $region8: #{run.27} parent=0 // pred_region
    _
  $region9: #{run.27} parent=0 // pred_fallthru
    _
  %p12 = scmp.eq.s32.totalorder 0, 0
  // Predicated region
  $region10: #{run.27} parent=0 // pred_check
    %p13 = pneg %p12
  $region11: #{run.27} parent=0 // pred_check_branch
    %15 = sbr.rel (%p13) target = $region13
  $region12: #{run.27} parent=0 // pred_region
    %vm16 = vcmask 1024
    %17 = vst.msk [vmem:[#allocation2] sm:$0x3] %vm16, -inf
    %18 = vst.msk [vmem:[%s2] sm:$0x3] %vm16, 0
  $region13: #{run.27} parent=0 // pred_fallthru
    _
  %v19 = vld [vmem:[%s0] sm:$0x1]
  %v20 = vld [vmem:[%s1] sm:$0xf]
  %v21 = vld [vmem:[%s1 + $0x4] sm:$0xf]
  %v22 = vld [vmem:[%s1 + $0x8] sm:$0xf]
  %v23 = vld [vmem:[%s1 + $0xc] sm:$0xf]
  %v28 = vunpack.c.l.b16 %v20
  %v29 = vunpack.c.l.b16 %v21
  %v30 = vunpack.c.l.b16 %v22
  %v31 = vunpack.c.l.b16 %v23
  %v32 = vpack.c.b16 %v29, %v28
  %v33 = vpack.c.b16 %v31, %v30
  %vm36 = vcmask 261120
  %v38 = vsel %vm36, %v19, 0
  %40 = vmatpush.bf16.msra.mxu0 0
  %41 = vmatpush.bf16.msra.mxu0 0
  %42 = vmatpush.bf16.msra.mxu0 0
  %43 = vmatpush.bf16.msra.mxu0 0
  %44 = vmatpush.bf16.msra.mxu0 0
  %45 = vmatpush.bf16.msra.mxu0 0
  %46 = vmatpush.bf16.msra.mxu0 %v33
  %47 = vmatpush.bf16.msra.mxu0 %v32
  %48 = vmatmul.bf16.gmra.mxu0 %v38
  %v49 = vpop.f32.mrf.mxu0
  %v50 = vadd.f32 0.0, %v49
  %v51 = vpop.f32.mrf.mxu0
  %52 = vdwg.mxu0
  %v53 = vlaneseq
  %v54 = vand.u32 %v53, 127
  %s55 = smul.u32 0, 128
  %v56 = vstv %s55
  %v57 = vadd.s32 %v54, %v56
  %vm58 = vcmp.lt.s32.totalorder %v57, 64
  %v59 = vsel %vm58, %v50, -inf
  %vm60 = vcmask 1041408
  %v61 = vsel %vm60, %v59, -inf
  %62 = vmax.xlane.f32.xlu0 %v61
  %v63 = vpop.xlane.xlu0 %62
  %vm64 = vcmp.eq.f32.partialorder %v59, %v63
  %v65 = vsel %vm64, %v57, 1073741824
  %v66 = vsel %vm60, %v65, 2147483647
  %v67 = vand.u32 %v66, 65535
  %v68 = vshra.s32 %v66, 16
  %v69 = vcvt.s32.f32 %v67
  %v70 = vcvt.s32.f32 %v68
  %71 = vmin.xlane.f32.xlu0 %v70
  %v72 = vpop.xlane.xlu0 %71
  %vm73 = vcmp.eq.f32.partialorder %v70, %v72
  %v74 = vsel %vm73, %v69, inf
  %75 = vmin.xlane.f32.xlu0 %v74
  %v76 = vpop.xlane.xlu0 %75
  %v77 = vcvt.f32.s32 %v76
  %v78 = vcvt.f32.s32 %v72
  %v79 = vshll.u32 %v78, 16
  %v80 = vadd.s32 %v79, %v77
  %v81 = vld [vmem:[#allocation2] sm:$0x3]
  %vm82 = vcmp.gt.f32.partialorder %v63, %v81
  %v83 = vld [vmem:[%s2] sm:$0x3]
  %v84 = vsel %vm82, %v80, %v83
  %vm85 = vcmask 1024
  %86 = vst.msk [vmem:[%s2] sm:$0x3] %vm85, %v84
  %v87 = vld [vmem:[#allocation2] sm:$0x3]
  %v88 = vmax.f32 %v87, %v63
  %89 = vst.msk [vmem:[#allocation2] sm:$0x3] %vm85, %v88
  // Predicated region
  $region14: #{run.27} parent=0 // pred_check
    _
  $region15: #{run.27} parent=0 // pred_check_branch
    %91 = sbr.rel (0) target = $region17
  $region16: #{run.27} parent=0 // pred_region
    _
  $region17: #{run.27} parent=0 // pred_fallthru
    _
  // Predicated region
  $region18: #{run.27} parent=0 // pred_check
    _
  $region19: #{run.27} parent=0 // pred_check_branch
    %93 = sbr.rel (0) target = $region21
  $region20: #{run.27} parent=0 // pred_region
    _
  $region21: #{run.27} parent=0 // pred_fallthru
    _

</llo_original>
